<compile_context>
chip_gen: v7x
topology: tpu7x:2x2x1
jax: 0.10.0
libtpu: 0.0.40
codegen_flags: <defaults>
</compile_context>

<pallas_src>
import functools

import jax
import jax.numpy as jnp
from jax.experimental import pallas as pl
from jax.experimental.pallas import tpu as pltpu


# ---------------------------------------------------------------------------
# Phase 1: accumulate per-metapath tanh activations over N, then beta = softmax
# ---------------------------------------------------------------------------
def _beta_kernel(z2d_ref, w1_ref, b1_ref, w2_ref, beta_ref, acc_ref,
                 *, n_nodes, num_mp):
    # z2d_ref : (TN*M, D)   tile of the flattened (N*M, D) input
    # w1_ref  : (D, H)      b1_ref: (1, H)      w2_ref: (1, H)
    # beta_ref: (M, 1)      output (written once, at the last grid step)
    # acc_ref : (M, H) f32  VMEM scratch accumulator (resident across the grid)
    i = pl.program_id(0)

    @pl.when(i == 0)
    def _init():
        acc_ref[...] = jnp.zeros_like(acc_ref)

    tnm, _ = z2d_ref.shape          # rows in this tile = TN * M (static)
    h_dim = w1_ref.shape[1]

    # Single lane-dense 2D MXU matmul, native input dtype, f32 accumulation.
    h = jnp.tanh(
        jnp.dot(z2d_ref[...], w1_ref[...], preferred_element_type=jnp.float32)
        + b1_ref[...].astype(jnp.float32)
    )                                                     # (TN*M, H) f32

    # Per-metapath sum over the nodes of this tile, with ragged-tile masking,
    # done as a tiny selection matmul (avoids in-kernel reshapes/relayouts):
    #   sel[m, r] = 1  iff  (r mod M == m) and global flat row is < N*M
    col = jax.lax.broadcasted_iota(jnp.int32, (num_mp, tnm), 1)
    row = jax.lax.broadcasted_iota(jnp.int32, (num_mp, tnm), 0)
    is_mp = (col % num_mp) == row
    is_valid = (i * tnm + col) < (n_nodes * num_mp)
    sel = jnp.where(jnp.logical_and(is_mp, is_valid), 1.0, 0.0).astype(jnp.float32)

    acc_ref[...] += jnp.dot(sel, h, preferred_element_type=jnp.float32)  # (M, H)

    @pl.when(i == pl.num_programs(0) - 1)
    def _finalize():
        h_mean = acc_ref[...] * (1.0 / n_nodes)                        # (M, H)
        # H -> 1 projection folded after the N-reduction (w2 is linear).
        s = jnp.sum(h_mean * w2_ref[...].astype(jnp.float32),
                    axis=1, keepdims=True)                             # (M, 1)
        s_max = jnp.max(s, axis=0, keepdims=True)
        e = jnp.exp(s - s_max)
        denom = jnp.sum(e, axis=0, keepdims=True)
        beta = e * pl.reciprocal(denom, approx=True)                   # (M, 1)
        beta_ref[...] = beta.astype(beta_ref.dtype)


# ---------------------------------------------------------------------------
# Phase 2: out[n, :] = sum_m beta[m] * z[n, m, :]   (mem-bound, parallel tiles)
# ---------------------------------------------------------------------------
def _weighted_sum_kernel(beta_ref, z_ref, out_ref):
    beta = beta_ref[...].astype(jnp.float32)              # (M, 1)
    z = z_ref[...]                                        # (TN, M, D)
    acc = jnp.sum(beta[None, :, :] * z.astype(jnp.float32), axis=1)  # (TN, D)
    out_ref[...] = acc.astype(out_ref.dtype)


# ---------------------------------------------------------------------------
# Wrapper
# ---------------------------------------------------------------------------
def semantic_attention(z, w1, b1, w2, *, tile_n=256):
    """z: (N, M, D); w1: (D, H); b1: (H,); w2: (H,). Returns (N, D)."""
    N, M, D = z.shape
    H = w1.shape[1]

    tn = min(tile_n, N)
    if tn < N:
        tn = max(8, (tn // 8) * 8)     # multiple of 8 when actually tiling
    grid_n = pl.cdiv(N, tn)

    z2d = z.reshape(N * M, D)          # free row-major flatten in the wrapper
    b1_2d = b1.reshape(1, H)
    w2_row = w2.reshape(1, H)

    vmem_cap = 32 * 1024 * 1024

    # --- Phase 1: beta (M, 1) ---
    beta = pl.pallas_call(
        functools.partial(_beta_kernel, n_nodes=N, num_mp=M),
        out_shape=jax.ShapeDtypeStruct((M, 1), jnp.float32),
        grid_spec=pltpu.PrefetchScalarGridSpec(
            num_scalar_prefetch=0,
            grid=(grid_n,),
            in_specs=[
                pl.BlockSpec((tn * M, D), lambda i: (i, 0)),
                pl.BlockSpec((D, H), lambda i: (0, 0)),
                pl.BlockSpec((1, H), lambda i: (0, 0)),
                pl.BlockSpec((1, H), lambda i: (0, 0)),
            ],
            out_specs=pl.BlockSpec((M, 1), lambda i: (0, 0)),
            scratch_shapes=[pltpu.VMEM((M, H), jnp.float32)],
        ),
        compiler_params=pltpu.CompilerParams(
            dimension_semantics=("arbitrary",),   # resident accumulator/output
            vmem_limit_bytes=vmem_cap,
        ),
    )(z2d, w1, b1_2d, w2_row)

    # --- Phase 2: weighted sum over metapaths ---
    out = pl.pallas_call(
        _weighted_sum_kernel,
        out_shape=jax.ShapeDtypeStruct((N, D), z.dtype),
        grid_spec=pltpu.PrefetchScalarGridSpec(
            num_scalar_prefetch=0,
            grid=(grid_n,),
            in_specs=[
                pl.BlockSpec((M, 1), lambda i: (0, 0)),
                pl.BlockSpec((tn, M, D), lambda i: (i, 0, 0)),
            ],
            out_specs=pl.BlockSpec((tn, D), lambda i: (i, 0)),
        ),
        compiler_params=pltpu.CompilerParams(
            dimension_semantics=("parallel",),    # shard tiles across TCs (v7x)
            vmem_limit_bytes=vmem_cap,
        ),
    )(beta, z)
    return out


def semantic_attention_ref(z, w1, b1, w2):
    """Pure-JAX reference mirroring the PyTorch module."""
    s = jnp.tanh(jnp.einsum("nmd,dh->nmh", z, w1) + b1) @ w2.reshape(-1, 1)  # (N,M,1)
    w = s.mean(axis=0)                           # (M, 1)
    beta = jax.nn.softmax(w, axis=0)             # (M, 1)
    return (beta[None, :, :] * z).sum(axis=1)    # (N, D)


if __name__ == "__main__":
    # Small but non-trivial shapes: 512 nodes, 4 metapaths, in_size=32,
    # hidden_size=128 (module default) -> exercises a 2-step grid per phase.
    N, M, D, H = 512, 4, 32, 128
    key = jax.random.PRNGKey(0)
    kz, kw1, kb1, kw2 = jax.random.split(key, 4)

    z = jax.random.normal(kz, (N, M, D), dtype=jnp.float32)
    lim1 = 1.0 / (D ** 0.5)
    lim2 = 1.0 / (H ** 0.5)
    w1 = jax.random.uniform(kw1, (D, H), minval=-lim1, maxval=lim1, dtype=jnp.float32)
    b1 = jax.random.uniform(kb1, (H,), minval=-lim1, maxval=lim1, dtype=jnp.float32)
    w2 = jax.random.uniform(kw2, (H,), minval=-lim2, maxval=lim2, dtype=jnp.float32)

    out = jax.block_until_ready(semantic_attention(z, w1, b1, w2))
    ref = jax.block_until_ready(semantic_attention_ref(z, w1, b1, w2))

    assert out.shape == (N, D)
    # approx reciprocal in the softmax denominator -> slightly looser tolerance
    assert jnp.allclose(out, ref, atol=2e-3, rtol=2e-3), "mismatch vs reference"
    print("KERNEL_OK")
</pallas_src>

<mosaic_0001>
module attributes {stable_mosaic.version = 11 : i64} {
  func.func @_beta_kernel(%arg0: i32, %arg1: memref<1024x32xf32, #tpu.memory_space<vmem>>, %arg2: memref<32x128xf32, #tpu.memory_space<vmem>>, %arg3: memref<1x128xf32, #tpu.memory_space<vmem>>, %arg4: memref<1x128xf32, #tpu.memory_space<vmem>>, %arg5: memref<4x1xf32, #tpu.memory_space<vmem>>, %arg6: memref<4x128xf32, #tpu.memory_space<vmem>>) attributes {dimension_semantics = [#tpu.dimension_semantics<arbitrary>], iteration_bounds = array<i64: 2>, scalar_prefetch = 0 : i64, scratch_operands = 1 : i64, tpu.core_type = #tpu.core_type<tc>, window_params = [{transform_indices = @transform_0, window_bounds = array<i64: 1024, 32>}, {pipeline_mode = #tpu.pipeline_mode<synchronous>, transform_indices = @transform_1, window_bounds = array<i64: 32, 128>}, {pipeline_mode = #tpu.pipeline_mode<synchronous>, transform_indices = @transform_2, window_bounds = array<i64: 1, 128>}, {pipeline_mode = #tpu.pipeline_mode<synchronous>, transform_indices = @transform_3, window_bounds = array<i64: 1, 128>}, {pipeline_mode = #tpu.pipeline_mode<synchronous>, transform_indices = @transform_4, window_bounds = array<i64: 4, 1>}]} {
    %c0_i32 = arith.constant 0 : i32
    %0 = arith.cmpi eq, %arg0, %c0_i32 : i32
    %1 = arith.extui %0 : i1 to i32
    %c0_i32_0 = arith.constant 0 : i32
    %2 = arith.cmpi ne, %1, %c0_i32_0 : i32
    scf.if %2 {
      %cst_19 = arith.constant 0.000000e+00 : f32
      %45 = vector.broadcast %cst_19 : f32 to vector<4x128xf32>
      %c0_20 = arith.constant 0 : index
      %c0_21 = arith.constant 0 : index
      %46 = vector.load %arg6[%c0_20, %c0_21] : memref<4x128xf32, #tpu.memory_space<vmem>>, vector<4x128xf32>
      tpu.vector_store %arg6[%c0_20, %c0_21], %45 {strides = array<i32>} : memref<4x128xf32, #tpu.memory_space<vmem>>, vector<4x128xf32>,
    } else {
    }
    %c0 = arith.constant 0 : index
    %c0_1 = arith.constant 0 : index
    %3 = vector.load %arg1[%c0, %c0_1] : memref<1024x32xf32, #tpu.memory_space<vmem>>, vector<1024x32xf32>
    %c0_2 = arith.constant 0 : index
    %c0_3 = arith.constant 0 : index
    %4 = vector.load %arg2[%c0_2, %c0_3] : memref<32x128xf32, #tpu.memory_space<vmem>>, vector<32x128xf32>
    %cst = arith.constant dense<0.000000e+00> : vector<1024x128xf32>
    %5 = tpu.matmul %3, %4, %cst {dimension_numbers = #tpu.dot_dimension_numbers<[1], [0], [0], [1], [0, 0, 1, 1], [], []>} : vector<1024x32xf32>, vector<32x128xf32>, vector<1024x128xf32> -> vector<1024x128xf32>
    %c0_4 = arith.constant 0 : index
    %c0_5 = arith.constant 0 : index
    %6 = vector.load %arg3[%c0_4, %c0_5] : memref<1x128xf32, #tpu.memory_space<vmem>>, vector<1x128xf32>
    %7 = vector.broadcast %6 : vector<1x128xf32> to vector<1024x128xf32>
    %8 = arith.addf %5, %7 : vector<1024x128xf32>
    %9 = math.tanh %8 : vector<1024x128xf32>
    %10 = tpu.iota {dimensions = array<i32: 1>} : vector<4x1024xi32>
    %11 = tpu.iota {dimensions = array<i32: 0>} : vector<4x1024xi32>
    %c4_i32 = arith.constant 4 : i32
    %c0_i32_6 = arith.constant 0 : i32
    %12 = arith.cmpi eq, %c4_i32, %c0_i32_6 : i32
    %c1_i32 = arith.constant 1 : i32
    %13 = arith.select %12, %c1_i32, %c4_i32 : i32
    %14 = vector.broadcast %13 : i32 to vector<4x1024xi32>
    %15 = arith.remsi %10, %14 : vector<4x1024xi32>
    %c0_i32_7 = arith.constant 0 : i32
    %16 = vector.broadcast %c0_i32_7 : i32 to vector<4x1024xi32>
    %17 = arith.cmpi ne, %15, %16 : vector<4x1024xi32>
    %c0_i32_8 = arith.constant 0 : i32
    %18 = vector.broadcast %c0_i32_8 : i32 to vector<4x1024xi32>
    %19 = arith.cmpi slt, %15, %18 : vector<4x1024xi32>
    %c0_i32_9 = arith.constant 0 : i32
    %20 = arith.cmpi slt, %13, %c0_i32_9 : i32
    %21 = vector.broadcast %20 : i1 to vector<4x1024xi1>
    %22 = vector.broadcast %21 : vector<4x1024xi1> to vector<4x1024xi1>
    %23 = arith.xori %19, %22 : vector<4x1024xi1>
    %24 = arith.andi %23, %17 : vector<4x1024xi1>
    %25 = vector.broadcast %13 : i32 to vector<4x1024xi32>
    %26 = arith.addi %15, %25 : vector<4x1024xi32>
    %27 = arith.select %24, %26, %15 : vector<4x1024xi1>, vector<4x1024xi32>
    %28 = arith.cmpi eq, %27, %11 : vector<4x1024xi32>
    %c1024_i32 = arith.constant 1024 : i32
    %29 = arith.muli %arg0, %c1024_i32 : i32
    %30 = vector.broadcast %29 : i32 to vector<4x1024xi32>
    %31 = arith.addi %30, %10 : vector<4x1024xi32>
    %c2048_i32 = arith.constant 2048 : i32
    %32 = vector.broadcast %c2048_i32 : i32 to vector<4x1024xi32>
    %33 = arith.cmpi slt, %31, %32 : vector<4x1024xi32>
    %34 = arith.andi %28, %33 : vector<4x1024xi1>
    %cst_10 = arith.constant 1.000000e+00 : f32
    %cst_11 = arith.constant 0.000000e+00 : f32
    %35 = vector.broadcast %cst_10 : f32 to vector<4x1024xf32>
    %36 = vector.broadcast %cst_11 : f32 to vector<4x1024xf32>
    %37 = arith.select %34, %35, %36 : vector<4x1024xi1>, vector<4x1024xf32>
    %c0_12 = arith.constant 0 : index
    %c0_13 = arith.constant 0 : index
    %38 = vector.load %arg6[%c0_12, %c0_13] : memref<4x128xf32, #tpu.memory_space<vmem>>, vector<4x128xf32>
    %cst_14 = arith.constant dense<0.000000e+00> : vector<4x128xf32>
    %39 = tpu.matmul %37, %9, %cst_14 {dimension_numbers = #tpu.dot_dimension_numbers<[1], [0], [0], [1], [0, 0, 1, 1], [], []>} : vector<4x1024xf32>, vector<1024x128xf32>, vector<4x128xf32> -> vector<4x128xf32>
    %40 = arith.addf %38, %39 : vector<4x128xf32>
    %c0_15 = arith.constant 0 : index
    %c0_16 = arith.constant 0 : index
    %41 = vector.load %arg6[%c0_15, %c0_16] : memref<4x128xf32, #tpu.memory_space<vmem>>, vector<4x128xf32>
    tpu.vector_store %arg6[%c0_15, %c0_16], %40 {strides = array<i32>} : memref<4x128xf32, #tpu.memory_space<vmem>>, vector<4x128xf32>,
    %c1_i32_17 = arith.constant 1 : i32
    %42 = arith.cmpi eq, %arg0, %c1_i32_17 : i32
    %43 = arith.extui %42 : i1 to i32
    %c0_i32_18 = arith.constant 0 : i32
    %44 = arith.cmpi ne, %43, %c0_i32_18 : i32
    scf.if %44 {
      %c0_19 = arith.constant 0 : index
      %c0_20 = arith.constant 0 : index
      %45 = vector.load %arg6[%c0_19, %c0_20] : memref<4x128xf32, #tpu.memory_space<vmem>>, vector<4x128xf32>
      %cst_21 = arith.constant 0.001953125 : f32
      %46 = vector.broadcast %cst_21 : f32 to vector<4x128xf32>
      %47 = arith.mulf %45, %46 : vector<4x128xf32>
      %c0_22 = arith.constant 0 : index
      %c0_23 = arith.constant 0 : index
      %48 = vector.load %arg4[%c0_22, %c0_23] : memref<1x128xf32, #tpu.memory_space<vmem>>, vector<1x128xf32>
      %49 = vector.broadcast %48 : vector<1x128xf32> to vector<4x128xf32>
      %50 = arith.mulf %47, %49 : vector<4x128xf32>
      %cst_24 = arith.constant dense<0.000000e+00> : vector<4xf32>
      %51 = vector.multi_reduction <add>, %50, %cst_24 [1] : vector<4x128xf32> to vector<4xf32>
      %52 = vector.shape_cast %51 : vector<4xf32> to vector<4x1xf32>
      %cst_25 = arith.constant dense<0xFF800000> : vector<1xf32>
      %53 = vector.multi_reduction <maximumf>, %52, %cst_25 [0] : vector<4x1xf32> to vector<1xf32>
      %54 = vector.shape_cast %53 : vector<1xf32> to vector<1x1xf32>
      %55 = vector.broadcast %54 : vector<1x1xf32> to vector<4x1xf32>
      %56 = arith.subf %52, %55 : vector<4x1xf32>
      %57 = math.exp %56 : vector<4x1xf32>
      %cst_26 = arith.constant dense<0.000000e+00> : vector<1xf32>
      %58 = vector.multi_reduction <add>, %57, %cst_26 [0] : vector<4x1xf32> to vector<1xf32>
      %59 = vector.shape_cast %58 : vector<1xf32> to vector<1x1xf32>
      %60 = tpu.reciprocal %59 {approx = true} : vector<1x1xf32> -> vector<1x1xf32>
      %61 = vector.broadcast %60 : vector<1x1xf32> to vector<4x1xf32>
      %62 = arith.mulf %57, %61 : vector<4x1xf32>
      %c0_27 = arith.constant 0 : index
      %c0_28 = arith.constant 0 : index
      %63 = vector.load %arg5[%c0_27, %c0_28] : memref<4x1xf32, #tpu.memory_space<vmem>>, vector<4x1xf32>
      tpu.vector_store %arg5[%c0_27, %c0_28], %62 {strides = array<i32>} : memref<4x1xf32, #tpu.memory_space<vmem>>, vector<4x1xf32>,
    } else {
    }
    return
  }
  func.func @transform_0(%arg0: i32) -> (i32, i32) {
    %c0_i32 = arith.constant 0 : i32
    %c0_i32_0 = arith.constant 0 : i32
    return %arg0, %c0_i32 : i32, i32
  }
  func.func @transform_1(%arg0: i32) -> (i32, i32) {
    %c0_i32 = arith.constant 0 : i32
    %c0_i32_0 = arith.constant 0 : i32
    %c0_i32_1 = arith.constant 0 : i32
    return %c0_i32, %c0_i32_0 : i32, i32
  }
  func.func @transform_2(%arg0: i32) -> (i32, i32) {
    %c0_i32 = arith.constant 0 : i32
    %c0_i32_0 = arith.constant 0 : i32
    %c0_i32_1 = arith.constant 0 : i32
    return %c0_i32, %c0_i32_0 : i32, i32
  }
  func.func @transform_3(%arg0: i32) -> (i32, i32) {
    %c0_i32 = arith.constant 0 : i32
    %c0_i32_0 = arith.constant 0 : i32
    %c0_i32_1 = arith.constant 0 : i32
    return %c0_i32, %c0_i32_0 : i32, i32
  }
  func.func @transform_4(%arg0: i32) -> (i32, i32) {
    %c0_i32 = arith.constant 0 : i32
    %c0_i32_0 = arith.constant 0 : i32
    %c0_i32_1 = arith.constant 0 : i32
    return %c0_i32, %c0_i32_0 : i32, i32
  }
}

</mosaic_0001>

<llo_original>
// kernel: tpu_custom_call.1
$region0: #{tpu_custom_call.1}
  #allocation0 [shape = 'u32[]', space=smem, size = 0x4, offset = 0x4, fixed_abs, tag = 'smem constant byte address 0x4 - core index']
  #allocation1 [shape = 'u32[144,128]{1,0:T(1,128)}', space=vmem, size = 0x12000, scoped, tag = 'internal scratch']
  #allocation2 [shape = 'f32[4,128]{1,0:T(4,128)}', space=vmem, size = 0x800, scoped, tag = 'scratch operand']
  %s0 = inlined_call_operand.vmem [shape: f32[2048,32], index: 0, kind: input, shape index: {}]
  %s1 = inlined_call_operand.vmem [shape: f32[32,128], index: 1, kind: input, shape index: {}]
  %s2 = inlined_call_operand.vmem [shape: f32[1,128], index: 2, kind: input, shape index: {}]
  %s3 = inlined_call_operand.vmem [shape: f32[1,128], index: 3, kind: input, shape index: {}]
  %s4 = inlined_call_operand.vmem [shape: f32[4,1], index: 4, kind: output, shape index: {}]
  %s5 = sld [smem:[#allocation0]]
  $region57: #{tpu_custom_call.1} parent=0
    _
  %s7 = ssub.s32 1, %s5
  %s8 = scalar_select 0, %s7, %s5
  loop: start=0, step=1, limit=4
  $region2: #{tpu_custom_call.1} parent=0 // loop_pre_header
    _
  $region3: #{tpu_custom_call.1} parent=0 // loop_header
    %s10 = sphi 0, %s14
    %p11 = scmp.ge.s32.totalorder %s10, 4
    %s20 = sphi 0, %s22
    %s23 = sphi 0, %s20
    %s24 = sphi 0, %s23
    %s40 = sphi 0, %s24
    %s44 = sphi 0, %s44
    %s46 = sphi 0, %s44
    %s47 = sphi 0, %s46
    %s61 = sphi 0, %s47
    %s65 = sphi 0, %s65
    %s67 = sphi 0, %s65
    %s68 = sphi 0, %s67
    %s82 = sphi 0, %s68
    %s86 = sphi 0, %s86
    %s88 = sphi 0, %s86
    %s89 = sphi 0, %s88
    %s103 = sphi 0, %s89
    %s107 = sphi 0, %s107
    %s109 = sphi 0, %s107
    %s110 = sphi 0, %s109
    %s124 = sphi 0, %s110
  $region4: #{tpu_custom_call.1} parent=0 // loop_header_branch
    %13 = sbr.rel (%p11) target = $region8
  $region5: #{tpu_custom_call.1} parent=0 // loop_body
    %s15 = ssub.s32 %s10, 1
    %s16 = ssub.s32 %s10, 2
    %s17 = sadd.s32 %s10, 1
    %s18 = ssub.s32 %s10, %s17
    %p19 = scmp.eq.s32.totalorder %s18, 0
    %s21 = sadd.s32 %s20, 1
    %s22 = scalar_select %p19, %s20, %s21
    %p25 = pneg %p19
    %p26 = scmp.eq.s32.totalorder %s10, 1
    %p27 = por %p25, %p26
    %p28 = scmp.ne.s32.totalorder %s20, %s23
    %p29 = scmp.eq.s32.totalorder %s10, 0
    %p30 = por %p28, %p29
    %p31 = scmp.ne.s32.totalorder %s20, %s23
    %p32 = scmp.eq.s32.totalorder %s15, 1
    %p33 = por %p31, %p32
    %p34 = scmp.ne.s32.totalorder %s23, %s24
    %p35 = scmp.eq.s32.totalorder %s15, 0
    %p36 = por %p34, %p35
    %p37 = scmp.ne.s32.totalorder %s23, %s24
    %p38 = scmp.eq.s32.totalorder %s16, 1
    %p39 = por %p37, %p38
    %p41 = scmp.ne.s32.totalorder %s24, %s40
    %p42 = scmp.eq.s32.totalorder %s16, 0
    %p43 = por %p41, %p42
    %s45 = sadd.s32 %s44, 1
    %p48 = scmp.eq.s32.totalorder %s10, 1
    %p49 = scmp.ne.s32.totalorder %s44, %s46
    %p50 = scmp.eq.s32.totalorder %s10, 0
    %p51 = por %p49, %p50
    %p52 = scmp.ne.s32.totalorder %s44, %s46
    %p53 = scmp.eq.s32.totalorder %s15, 1
    %p54 = por %p52, %p53
    %p55 = scmp.ne.s32.totalorder %s46, %s47
    %p56 = scmp.eq.s32.totalorder %s15, 0
    %p57 = por %p55, %p56
    %p58 = scmp.ne.s32.totalorder %s46, %s47
    %p59 = scmp.eq.s32.totalorder %s16, 1
    %p60 = por %p58, %p59
    %p62 = scmp.ne.s32.totalorder %s47, %s61
    %p63 = scmp.eq.s32.totalorder %s16, 0
    %p64 = por %p62, %p63
    %s66 = sadd.s32 %s65, 1
    %p69 = scmp.eq.s32.totalorder %s10, 1
    %p70 = scmp.ne.s32.totalorder %s65, %s67
    %p71 = scmp.eq.s32.totalorder %s10, 0
    %p72 = por %p70, %p71
    %p73 = scmp.ne.s32.totalorder %s65, %s67
    %p74 = scmp.eq.s32.totalorder %s15, 1
    %p75 = por %p73, %p74
    %p76 = scmp.ne.s32.totalorder %s67, %s68
    %p77 = scmp.eq.s32.totalorder %s15, 0
    %p78 = por %p76, %p77
    %p79 = scmp.ne.s32.totalorder %s67, %s68
    %p80 = scmp.eq.s32.totalorder %s16, 1
    %p81 = por %p79, %p80
    %p83 = scmp.ne.s32.totalorder %s68, %s82
    %p84 = scmp.eq.s32.totalorder %s16, 0
    %p85 = por %p83, %p84
    %s87 = sadd.s32 %s86, 1
    %p90 = scmp.eq.s32.totalorder %s10, 1
    %p91 = scmp.ne.s32.totalorder %s86, %s88
    %p92 = scmp.eq.s32.totalorder %s10, 0
    %p93 = por %p91, %p92
    %p94 = scmp.ne.s32.totalorder %s86, %s88
    %p95 = scmp.eq.s32.totalorder %s15, 1
    %p96 = por %p94, %p95
    %p97 = scmp.ne.s32.totalorder %s88, %s89
    %p98 = scmp.eq.s32.totalorder %s15, 0
    %p99 = por %p97, %p98
    %p100 = scmp.ne.s32.totalorder %s88, %s89
    %p101 = scmp.eq.s32.totalorder %s16, 1
    %p102 = por %p100, %p101
    %p104 = scmp.ne.s32.totalorder %s89, %s103
    %p105 = scmp.eq.s32.totalorder %s16, 0
    %p106 = por %p104, %p105
    %s108 = sadd.s32 %s107, 1
    %p111 = scmp.eq.s32.totalorder %s10, 1
    %p112 = scmp.ne.s32.totalorder %s107, %s109
    %p113 = scmp.eq.s32.totalorder %s10, 0
    %p114 = por %p112, %p113
    %p115 = scmp.ne.s32.totalorder %s107, %s109
    %p116 = scmp.eq.s32.totalorder %s15, 1
    %p117 = por %p115, %p116
    %p118 = scmp.ne.s32.totalorder %s109, %s110
    %p119 = scmp.eq.s32.totalorder %s15, 0
    %p120 = por %p118, %p119
    %p121 = scmp.ne.s32.totalorder %s109, %s110
    %p122 = scmp.eq.s32.totalorder %s16, 1
    %p123 = por %p121, %p122
    %p125 = scmp.ne.s32.totalorder %s110, %s124
    %p126 = scmp.eq.s32.totalorder %s16, 0
    %p127 = por %p125, %p126
    %p128 = scmp.le.s32.totalorder 1, %s10
    %p129 = scmp.lt.s32.totalorder %s10, 3
    %p130 = pnand %p128, %p129
    %p131 = pneg %p130
    // Predicated region
    $region9: #{tpu_custom_call.1} parent=5 // pred_check
      _
    $region10: #{tpu_custom_call.1} parent=5 // pred_check_branch
      %133 = sbr.rel (%p130) target = $region12
    $region11: #{tpu_custom_call.1} parent=5 // pred_region
      %s134 = ssub.s32 %s10, 1
      // Predicated region
      $region13: #{tpu_custom_call.1} parent=11 // pred_check
        %p135 = pneg %p57
      $region14: #{tpu_custom_call.1} parent=11 // pred_check_branch
        %137 = sbr.rel (%p135) target = $region16
      $region15: #{tpu_custom_call.1} parent=11 // pred_region
        _
      $region16: #{tpu_custom_call.1} parent=11 // pred_fallthru
        _
      // Predicated region
      $region17: #{tpu_custom_call.1} parent=11 // pred_check
        %p138 = pneg %p78
      $region18: #{tpu_custom_call.1} parent=11 // pred_check_branch
        %140 = sbr.rel (%p138) target = $region20
      $region19: #{tpu_custom_call.1} parent=11 // pred_region
        _
      $region20: #{tpu_custom_call.1} parent=11 // pred_fallthru
        _
      // Predicated region
      $region21: #{tpu_custom_call.1} parent=11 // pred_check
        %p141 = pneg %p99
      $region22: #{tpu_custom_call.1} parent=11 // pred_check_branch
        %143 = sbr.rel (%p141) target = $region24
      $region23: #{tpu_custom_call.1} parent=11 // pred_region
        _
      $region24: #{tpu_custom_call.1} parent=11 // pred_fallthru
        _
    $region12: #{tpu_custom_call.1} parent=5 // pred_fallthru
      _
    %p144 = scmp.lt.s32.totalorder %s10, 2
    // Predicated region
    $region25: #{tpu_custom_call.1} parent=5 // pred_check
      %p145 = pneg %p144
    $region26: #{tpu_custom_call.1} parent=5 // pred_check_branch
      %147 = sbr.rel (%p145) target = $region28
    $region27: #{tpu_custom_call.1} parent=5 // pred_region
      // Predicated region
      $region29: #{tpu_custom_call.1} parent=27 // pred_check
        %p148 = pneg %p30
      $region30: #{tpu_custom_call.1} parent=27 // pred_check_branch
        %150 = sbr.rel (%p148) target = $region32
      $region31: #{tpu_custom_call.1} parent=27 // pred_region
        %s151 = smul.u32 128, %s10
        %p152 = scmp.lt.s32.totalorder %s151, 255
        %s153 = scalar_select %p152, %s151, 255
        %s154 = smul.addr %s153, 8
        %s155 = scalar_lea.vmem %s0, %s154
        %s156 = smul.u32 128, %s10
      $region32: #{tpu_custom_call.1} parent=27 // pred_fallthru
        _
    $region28: #{tpu_custom_call.1} parent=5 // pred_fallthru
      _
    %p157 = scmp.le.s32.totalorder 1, %s10
    %p158 = scmp.lt.s32.totalorder %s10, 3
    %p159 = pnand %p157, %p158
    %p160 = pneg %p159
    // Predicated region
    $region33: #{tpu_custom_call.1} parent=5 // pred_check
      _
    $region34: #{tpu_custom_call.1} parent=5 // pred_check_branch
      %162 = sbr.rel (%p159) target = $region36
    $region35: #{tpu_custom_call.1} parent=5 // pred_region
      %s163 = ssub.s32 %s10, 1
      %s164 = smul.u32 128, %s15
      %p165 = scmp.lt.s32.totalorder %s164, 255
      %s166 = scalar_select %p165, %s164, 255
      %s167 = smul.addr %s166, 8
      %s168 = scalar_lea.vmem %s0, %s167
      %p169 = pneg %p36
      %p170 = pneg %p33
      %p171 = pneg %p57
      %p172 = pneg %p54
      %p173 = pneg %p78
      %p174 = pneg %p75
      %p175 = pneg %p99
      %p176 = pneg %p96
      %p177 = pneg %p120
      %p178 = pneg %p117
      %s179 = smul.u32 128, %s15
      %p180 = scmp.lt.s32.totalorder %s179, 255
      %s181 = scalar_select %p180, %s179, 255
      %s182 = smul.addr %s181, 8
      %s183 = scalar_lea.vmem %s0, %s182
      %s184 = smul.u32 128, %s15
      %p185 = scmp.eq.s32.totalorder %s15, 0
      // Predicated region
      $region37: #{tpu_custom_call.1} parent=35 // pred_check
        %p186 = pneg %p185
      $region38: #{tpu_custom_call.1} parent=35 // pred_check_branch
        %188 = sbr.rel (%p186) target = $region40
      $region39: #{tpu_custom_call.1} parent=35 // pred_region
        %189 = vst [vmem:[#allocation2] sm:$0xf] 0.0
      $region40: #{tpu_custom_call.1} parent=35 // pred_fallthru
        _
      %v190 = vld [vmem:[%s183] sm:$0xff]
      %v191 = vld [vmem:[%s183 + $0x8] sm:$0xff]
      %v192 = vld [vmem:[%s183 + $0x10] sm:$0xff]
      %v193 = vld [vmem:[%s183 + $0x18] sm:$0xff]
      %v194 = vld [vmem:[%s183 + $0x20] sm:$0xff]
      %v195 = vld [vmem:[%s183 + $0x28] sm:$0xff]
      %v196 = vld [vmem:[%s183 + $0x30] sm:$0xff]
      %v197 = vld [vmem:[%s183 + $0x38] sm:$0xff]
      %v198 = vld [vmem:[%s183 + $0x40] sm:$0xff]
      %v199 = vld [vmem:[%s183 + $0x48] sm:$0xff]
      %v200 = vld [vmem:[%s183 + $0x50] sm:$0xff]
      %v201 = vld [vmem:[%s183 + $0x58] sm:$0xff]
      %v202 = vld [vmem:[%s183 + $0x60] sm:$0xff]
      %v203 = vld [vmem:[%s183 + $0x68] sm:$0xff]
      %v204 = vld [vmem:[%s183 + $0x70] sm:$0xff]
      %v205 = vld [vmem:[%s183 + $0x78] sm:$0xff]
      %v206 = vld [vmem:[%s183 + $0x80] sm:$0xff]
      %v207 = vld [vmem:[%s183 + $0x88] sm:$0xff]
      %v208 = vld [vmem:[%s183 + $0x90] sm:$0xff]
      %v209 = vld [vmem:[%s183 + $0x98] sm:$0xff]
      %v210 = vld [vmem:[%s183 + $0xa0] sm:$0xff]
      %v211 = vld [vmem:[%s183 + $0xa8] sm:$0xff]
      %v212 = vld [vmem:[%s183 + $0xb0] sm:$0xff]
      %v213 = vld [vmem:[%s183 + $0xb8] sm:$0xff]
      %v214 = vld [vmem:[%s183 + $0xc0] sm:$0xff]
      %v215 = vld [vmem:[%s183 + $0xc8] sm:$0xff]
      %v216 = vld [vmem:[%s183 + $0xd0] sm:$0xff]
      %v217 = vld [vmem:[%s183 + $0xd8] sm:$0xff]
      %v218 = vld [vmem:[%s183 + $0xe0] sm:$0xff]
      %v219 = vld [vmem:[%s183 + $0xe8] sm:$0xff]
      %v220 = vld [vmem:[%s183 + $0xf0] sm:$0xff]
      %v221 = vld [vmem:[%s183 + $0xf8] sm:$0xff]
      %v222 = vld [vmem:[%s183 + $0x100] sm:$0xff]
      %v223 = vld [vmem:[%s183 + $0x108] sm:$0xff]
      %v224 = vld [vmem:[%s183 + $0x110] sm:$0xff]
      %v225 = vld [vmem:[%s183 + $0x118] sm:$0xff]
      %v226 = vld [vmem:[%s183 + $0x120] sm:$0xff]
      %v227 = vld [vmem:[%s183 + $0x128] sm:$0xff]
      %v228 = vld [vmem:[%s183 + $0x130] sm:$0xff]
      %v229 = vld [vmem:[%s183 + $0x138] sm:$0xff]
      %v230 = vld [vmem:[%s183 + $0x140] sm:$0xff]
      %v231 = vld [vmem:[%s183 + $0x148] sm:$0xff]
      %v232 = vld [vmem:[%s183 + $0x150] sm:$0xff]
      %v233 = vld [vmem:[%s183 + $0x158] sm:$0xff]
      %v234 = vld [vmem:[%s183 + $0x160] sm:$0xff]
      %v235 = vld [vmem:[%s183 + $0x168] sm:$0xff]
      %v236 = vld [vmem:[%s183 + $0x170] sm:$0xff]
      %v237 = vld [vmem:[%s183 + $0x178] sm:$0xff]
      %v238 = vld [vmem:[%s183 + $0x180] sm:$0xff]
      %v239 = vld [vmem:[%s183 + $0x188] sm:$0xff]
      %v240 = vld [vmem:[%s183 + $0x190] sm:$0xff]
      %v241 = vld [vmem:[%s183 + $0x198] sm:$0xff]
      %v242 = vld [vmem:[%s183 + $0x1a0] sm:$0xff]
      %v243 = vld [vmem:[%s183 + $0x1a8] sm:$0xff]
      %v244 = vld [vmem:[%s183 + $0x1b0] sm:$0xff]
      %v245 = vld [vmem:[%s183 + $0x1b8] sm:$0xff]
      %v246 = vld [vmem:[%s183 + $0x1c0] sm:$0xff]
      %v247 = vld [vmem:[%s183 + $0x1c8] sm:$0xff]
      %v248 = vld [vmem:[%s183 + $0x1d0] sm:$0xff]
      %v249 = vld [vmem:[%s183 + $0x1d8] sm:$0xff]
      %v250 = vld [vmem:[%s183 + $0x1e0] sm:$0xff]
      %v251 = vld [vmem:[%s183 + $0x1e8] sm:$0xff]
      %v252 = vld [vmem:[%s183 + $0x1f0] sm:$0xff]
      %v253 = vld [vmem:[%s183 + $0x1f8] sm:$0xff]
      %v254 = vld [vmem:[%s183 + $0x200] sm:$0xff]
      %v255 = vld [vmem:[%s183 + $0x208] sm:$0xff]
      %v256 = vld [vmem:[%s183 + $0x210] sm:$0xff]
      %v257 = vld [vmem:[%s183 + $0x218] sm:$0xff]
      %v258 = vld [vmem:[%s183 + $0x220] sm:$0xff]
      %v259 = vld [vmem:[%s183 + $0x228] sm:$0xff]
      %v260 = vld [vmem:[%s183 + $0x230] sm:$0xff]
      %v261 = vld [vmem:[%s183 + $0x238] sm:$0xff]
      %v262 = vld [vmem:[%s183 + $0x240] sm:$0xff]
      %v263 = vld [vmem:[%s183 + $0x248] sm:$0xff]
      %v264 = vld [vmem:[%s183 + $0x250] sm:$0xff]
      %v265 = vld [vmem:[%s183 + $0x258] sm:$0xff]
      %v266 = vld [vmem:[%s183 + $0x260] sm:$0xff]
      %v267 = vld [vmem:[%s183 + $0x268] sm:$0xff]
      %v268 = vld [vmem:[%s183 + $0x270] sm:$0xff]
      %v269 = vld [vmem:[%s183 + $0x278] sm:$0xff]
      %v270 = vld [vmem:[%s183 + $0x280] sm:$0xff]
      %v271 = vld [vmem:[%s183 + $0x288] sm:$0xff]
      %v272 = vld [vmem:[%s183 + $0x290] sm:$0xff]
      %v273 = vld [vmem:[%s183 + $0x298] sm:$0xff]
      %v274 = vld [vmem:[%s183 + $0x2a0] sm:$0xff]
      %v275 = vld [vmem:[%s183 + $0x2a8] sm:$0xff]
      %v276 = vld [vmem:[%s183 + $0x2b0] sm:$0xff]
      %v277 = vld [vmem:[%s183 + $0x2b8] sm:$0xff]
      %v278 = vld [vmem:[%s183 + $0x2c0] sm:$0xff]
      %v279 = vld [vmem:[%s183 + $0x2c8] sm:$0xff]
      %v280 = vld [vmem:[%s183 + $0x2d0] sm:$0xff]
      %v281 = vld [vmem:[%s183 + $0x2d8] sm:$0xff]
      %v282 = vld [vmem:[%s183 + $0x2e0] sm:$0xff]
      %v283 = vld [vmem:[%s183 + $0x2e8] sm:$0xff]
      %v284 = vld [vmem:[%s183 + $0x2f0] sm:$0xff]
      %v285 = vld [vmem:[%s183 + $0x2f8] sm:$0xff]
      %v286 = vld [vmem:[%s183 + $0x300] sm:$0xff]
      %v287 = vld [vmem:[%s183 + $0x308] sm:$0xff]
      %v288 = vld [vmem:[%s183 + $0x310] sm:$0xff]
      %v289 = vld [vmem:[%s183 + $0x318] sm:$0xff]
      %v290 = vld [vmem:[%s183 + $0x320] sm:$0xff]
      %v291 = vld [vmem:[%s183 + $0x328] sm:$0xff]
      %v292 = vld [vmem:[%s183 + $0x330] sm:$0xff]
      %v293 = vld [vmem:[%s183 + $0x338] sm:$0xff]
      %v294 = vld [vmem:[%s183 + $0x340] sm:$0xff]
      %v295 = vld [vmem:[%s183 + $0x348] sm:$0xff]
      %v296 = vld [vmem:[%s183 + $0x350] sm:$0xff]
      %v297 = vld [vmem:[%s183 + $0x358] sm:$0xff]
      %v298 = vld [vmem:[%s183 + $0x360] sm:$0xff]
      %v299 = vld [vmem:[%s183 + $0x368] sm:$0xff]
      %v300 = vld [vmem:[%s183 + $0x370] sm:$0xff]
      %v301 = vld [vmem:[%s183 + $0x378] sm:$0xff]
      %v302 = vld [vmem:[%s183 + $0x380] sm:$0xff]
      %v303 = vld [vmem:[%s183 + $0x388] sm:$0xff]
      %v304 = vld [vmem:[%s183 + $0x390] sm:$0xff]
      %v305 = vld [vmem:[%s183 + $0x398] sm:$0xff]
      %v306 = vld [vmem:[%s183 + $0x3a0] sm:$0xff]
      %v307 = vld [vmem:[%s183 + $0x3a8] sm:$0xff]
      %v308 = vld [vmem:[%s183 + $0x3b0] sm:$0xff]
      %v309 = vld [vmem:[%s183 + $0x3b8] sm:$0xff]
      %v310 = vld [vmem:[%s183 + $0x3c0] sm:$0xff]
      %v311 = vld [vmem:[%s183 + $0x3c8] sm:$0xff]
      %v312 = vld [vmem:[%s183 + $0x3d0] sm:$0xff]
      %v313 = vld [vmem:[%s183 + $0x3d8] sm:$0xff]
      %v314 = vld [vmem:[%s183 + $0x3e0] sm:$0xff]
      %v315 = vld [vmem:[%s183 + $0x3e8] sm:$0xff]
      %v316 = vld [vmem:[%s183 + $0x3f0] sm:$0xff]
      %v317 = vld [vmem:[%s183 + $0x3f8] sm:$0xff]
      %v318 = vld [vmem:[%s1] sm:$0xff]
      %v319 = vld [vmem:[%s1 + $0x8] sm:$0xff]
      %v320 = vld [vmem:[%s1 + $0x10] sm:$0xff]
      %v321 = vld [vmem:[%s1 + $0x18] sm:$0xff]
      %v322 = vld [vmem:[%s2] sm:$0x1]
      %v324 = vlaneseq
      %v325 = vshrl.u32 %v324, 7
      %v326 = vsub.s32 0, %v325
      %v327 = vrot.slane %v322, %v326
      %vm329 = vcmask 261120
      %v331 = vsel %vm329, %v190, 0
      %v334 = vsel %vm329, %v191, 0
      %v337 = vsel %vm329, %v192, 0
      %v340 = vsel %vm329, %v193, 0
      %v343 = vsel %vm329, %v194, 0
      %v346 = vsel %vm329, %v195, 0
      %v349 = vsel %vm329, %v196, 0
      %v352 = vsel %vm329, %v197, 0
      %v355 = vsel %vm329, %v198, 0
      %v358 = vsel %vm329, %v199, 0
      %v361 = vsel %vm329, %v200, 0
      %v364 = vsel %vm329, %v201, 0
      %v367 = vsel %vm329, %v202, 0
      %v370 = vsel %vm329, %v203, 0
      %v373 = vsel %vm329, %v204, 0
      %v376 = vsel %vm329, %v205, 0
      %v379 = vsel %vm329, %v206, 0
      %v382 = vsel %vm329, %v207, 0
      %v385 = vsel %vm329, %v208, 0
      %v388 = vsel %vm329, %v209, 0
      %v391 = vsel %vm329, %v210, 0
      %v394 = vsel %vm329, %v211, 0
      %v397 = vsel %vm329, %v212, 0
      %v400 = vsel %vm329, %v213, 0
      %v403 = vsel %vm329, %v214, 0
      %v406 = vsel %vm329, %v215, 0
      %v409 = vsel %vm329, %v216, 0
      %v412 = vsel %vm329, %v217, 0
      %v415 = vsel %vm329, %v218, 0
      %v418 = vsel %vm329, %v219, 0
      %v421 = vsel %vm329, %v220, 0
      %v424 = vsel %vm329, %v221, 0
      %v427 = vsel %vm329, %v222, 0
      %v430 = vsel %vm329, %v223, 0
      %v433 = vsel %vm329, %v224, 0
      %v436 = vsel %vm329, %v225, 0
      %v439 = vsel %vm329, %v226, 0
      %v442 = vsel %vm329, %v227, 0
      %v445 = vsel %vm329, %v228, 0
      %v448 = vsel %vm329, %v229, 0
      %v451 = vsel %vm329, %v230, 0
      %v454 = vsel %vm329, %v231, 0
      %v457 = vsel %vm329, %v232, 0
      %v460 = vsel %vm329, %v233, 0
      %v463 = vsel %vm329, %v234, 0
      %v466 = vsel %vm329, %v235, 0
      %v469 = vsel %vm329, %v236, 0
      %v472 = vsel %vm329, %v237, 0
      %v475 = vsel %vm329, %v238, 0
      %v478 = vsel %vm329, %v239, 0
      %v481 = vsel %vm329, %v240, 0
      %v484 = vsel %vm329, %v241, 0
      %v487 = vsel %vm329, %v242, 0
      %v490 = vsel %vm329, %v243, 0
      %v493 = vsel %vm329, %v244, 0
      %v496 = vsel %vm329, %v245, 0
      %v499 = vsel %vm329, %v246, 0
      %v502 = vsel %vm329, %v247, 0
      %v505 = vsel %vm329, %v248, 0
      %v508 = vsel %vm329, %v249, 0
      %v511 = vsel %vm329, %v250, 0
      %v514 = vsel %vm329, %v251, 0
      %v517 = vsel %vm329, %v252, 0
      %v520 = vsel %vm329, %v253, 0
      %v523 = vsel %vm329, %v254, 0
      %v526 = vsel %vm329, %v255, 0
      %v529 = vsel %vm329, %v256, 0
      %v532 = vsel %vm329, %v257, 0
      %v535 = vsel %vm329, %v258, 0
      %v538 = vsel %vm329, %v259, 0
      %v541 = vsel %vm329, %v260, 0
      %v544 = vsel %vm329, %v261, 0
      %v547 = vsel %vm329, %v262, 0
      %v550 = vsel %vm329, %v263, 0
      %v553 = vsel %vm329, %v264, 0
      %v556 = vsel %vm329, %v265, 0
      %v559 = vsel %vm329, %v266, 0
      %v562 = vsel %vm329, %v267, 0
      %v565 = vsel %vm329, %v268, 0
      %v568 = vsel %vm329, %v269, 0
      %v571 = vsel %vm329, %v270, 0
      %v574 = vsel %vm329, %v271, 0
      %v577 = vsel %vm329, %v272, 0
      %v580 = vsel %vm329, %v273, 0
      %v583 = vsel %vm329, %v274, 0
      %v586 = vsel %vm329, %v275, 0
      %v589 = vsel %vm329, %v276, 0
      %v592 = vsel %vm329, %v277, 0
      %v595 = vsel %vm329, %v278, 0
      %v598 = vsel %vm329, %v279, 0
      %v601 = vsel %vm329, %v280, 0
      %v604 = vsel %vm329, %v281, 0
      %v607 = vsel %vm329, %v282, 0
      %v610 = vsel %vm329, %v283, 0
      %v613 = vsel %vm329, %v284, 0
      %v616 = vsel %vm329, %v285, 0
      %v619 = vsel %vm329, %v286, 0
      %v622 = vsel %vm329, %v287, 0
      %v625 = vsel %vm329, %v288, 0
      %v628 = vsel %vm329, %v289, 0
      %v631 = vsel %vm329, %v290, 0
      %v634 = vsel %vm329, %v291, 0
      %v637 = vsel %vm329, %v292, 0
      %v640 = vsel %vm329, %v293, 0
      %v643 = vsel %vm329, %v294, 0
      %v646 = vsel %vm329, %v295, 0
      %v649 = vsel %vm329, %v296, 0
      %v652 = vsel %vm329, %v297, 0
      %v655 = vsel %vm329, %v298, 0
      %v658 = vsel %vm329, %v299, 0
      %v661 = vsel %vm329, %v300, 0
      %v664 = vsel %vm329, %v301, 0
      %v667 = vsel %vm329, %v302, 0
      %v670 = vsel %vm329, %v303, 0
      %v673 = vsel %vm329, %v304, 0
      %v676 = vsel %vm329, %v305, 0
      %v679 = vsel %vm329, %v306, 0
      %v682 = vsel %vm329, %v307, 0
      %v685 = vsel %vm329, %v308, 0
      %v688 = vsel %vm329, %v309, 0
      %v691 = vsel %vm329, %v310, 0
      %v694 = vsel %vm329, %v311, 0
      %v697 = vsel %vm329, %v312, 0
      %v700 = vsel %vm329, %v313, 0
      %v703 = vsel %vm329, %v314, 0
      %v706 = vsel %vm329, %v315, 0
      %v709 = vsel %vm329, %v316, 0
      %v712 = vsel %vm329, %v317, 0
      %714 = vmatprep.subr.mxu0 0.0
      %715 = vmatpush1.msra.mxu0 %v318
      %716 = vmatprep.subr.mxu0 0.0
      %717 = vmatpush1.msra.mxu0 %v319
      %718 = vmatprep.subr.mxu0 0.0
      %719 = vmatpush1.msra.mxu0 %v320
      %720 = vmatprep.subr.mxu0 0.0
      %721 = vmatpush1.msra.mxu0 %v321
      %722 = vmatprep.subr.mxu0 0.0
      %723 = vmatpush1.msra.mxu0 0.0
      %724 = vmatprep.subr.mxu0 0.0
      %725 = vmatpush1.msra.mxu0 0.0
      %726 = vmatprep.subr.mxu0 0.0
      %727 = vmatpush1.msra.mxu0 0.0
      %728 = vmatprep.subr.mxu0 0.0
      %729 = vmatpush1.msra.mxu0 0.0
      %730 = vmatprep.subr.mxu0 0.0
      %731 = vmatpush1.msra.mxu0 0.0
      %732 = vmatprep.subr.mxu0 0.0
      %733 = vmatpush1.msra.mxu0 0.0
      %734 = vmatprep.subr.mxu0 0.0
      %735 = vmatpush1.msra.mxu0 0.0
      %736 = vmatprep.subr.mxu0 0.0
      %737 = vmatpush1.msra.mxu0 0.0
      %738 = vmatprep.subr.mxu0 0.0
      %739 = vmatpush1.msra.mxu0 0.0
      %740 = vmatprep.subr.mxu0 0.0
      %741 = vmatpush1.msra.mxu0 0.0
      %742 = vmatprep.subr.mxu0 0.0
      %743 = vmatpush1.msra.mxu0 0.0
      %744 = vmatprep.subr.mxu0 0.0
      %745 = vmatpush1.msra.mxu0 0.0
      %746 = vmatprep.subr.mxu0 0.0
      %747 = vmatpush1.msra.mxu0 0.0
      %748 = vmatprep.subr.mxu0 0.0
      %749 = vmatpush1.msra.mxu0 0.0
      %750 = vmatprep.subr.mxu0 0.0
      %751 = vmatpush1.msra.mxu0 0.0
      %752 = vmatprep.subr.mxu0 0.0
      %753 = vmatpush1.msra.mxu0 0.0
      %754 = vmatprep.subr.mxu0 0.0
      %755 = vmatpush1.msra.mxu0 0.0
      %756 = vmatprep.subr.mxu0 0.0
      %757 = vmatpush1.msra.mxu0 0.0
      %758 = vmatprep.subr.mxu0 0.0
      %759 = vmatpush1.msra.mxu0 0.0
      %760 = vmatprep.subr.mxu0 0.0
      %761 = vmatpush1.msra.mxu0 0.0
      %762 = vmatprep.subr.mxu0 0.0
      %763 = vmatpush1.msra.mxu0 0.0
      %764 = vmatprep.subr.mxu0 0.0
      %765 = vmatpush1.msra.mxu0 0.0
      %766 = vmatprep.subr.mxu0 0.0
      %767 = vmatpush1.msra.mxu0 0.0
      %768 = vmatprep.subr.mxu0 0.0
      %769 = vmatpush1.msra.mxu0 0.0
      %770 = vmatprep.subr.mxu0 0.0
      %771 = vmatpush1.msra.mxu0 0.0
      %772 = vmatprep.subr.mxu0 0.0
      %773 = vmatpush1.msra.mxu0 0.0
      %774 = vmatprep.subr.mxu0 0.0
      %775 = vmatpush1.msra.mxu0 0.0
      %776 = vmatprep.subr.mxu0 0.0
      %777 = vmatpush1.msra.mxu0 0.0
      %778 = vmatprep.mubr.f32.mxu0 0.0
      %779 = vmatmul.mubr.f32.gmra.mrb[0].mxu0 %v331
      %v780 = vpop.f32.mrb[0].mxu0
      %v781 = vadd.f32 %v327, %v780
      %v782 = vpop.f32.mrb[0].mxu0
      %783 = vmatprep.mubr.f32.mxu0 0.0
      %784 = vmatmul.mubr.f32.gmra.mrb[0].mxu0 %v334
      %v785 = vpop.f32.mrb[0].mxu0
      %v786 = vadd.f32 %v327, %v785
      %v787 = vpop.f32.mrb[0].mxu0
      %788 = vmatprep.mubr.f32.mxu0 0.0
      %789 = vmatmul.mubr.f32.gmra.mrb[0].mxu0 %v337
      %v790 = vpop.f32.mrb[0].mxu0
      %v791 = vadd.f32 %v327, %v790
      %v792 = vpop.f32.mrb[0].mxu0
      %793 = vmatprep.mubr.f32.mxu0 0.0
      %794 = vmatmul.mubr.f32.gmra.mrb[0].mxu0 %v340
      %v795 = vpop.f32.mrb[0].mxu0
      %v796 = vadd.f32 %v327, %v795
      %v797 = vpop.f32.mrb[0].mxu0
      %798 = vmatprep.mubr.f32.mxu0 0.0
      %799 = vmatmul.mubr.f32.gmra.mrb[0].mxu0 %v343
      %v800 = vpop.f32.mrb[0].mxu0
      %v801 = vadd.f32 %v327, %v800
      %v802 = vpop.f32.mrb[0].mxu0
      %803 = vmatprep.mubr.f32.mxu0 0.0
      %804 = vmatmul.mubr.f32.gmra.mrb[0].mxu0 %v346
      %v805 = vpop.f32.mrb[0].mxu0
      %v806 = vadd.f32 %v327, %v805
      %v807 = vpop.f32.mrb[0].mxu0
      %808 = vmatprep.mubr.f32.mxu0 0.0
      %809 = vmatmul.mubr.f32.gmra.mrb[0].mxu0 %v349
      %v810 = vpop.f32.mrb[0].mxu0
      %v811 = vadd.f32 %v327, %v810
      %v812 = vpop.f32.mrb[0].mxu0
      %813 = vmatprep.mubr.f32.mxu0 0.0
      %814 = vmatmul.mubr.f32.gmra.mrb[0].mxu0 %v352
      %v815 = vpop.f32.mrb[0].mxu0
      %v816 = vadd.f32 %v327, %v815
      %v817 = vpop.f32.mrb[0].mxu0
      %818 = vmatprep.mubr.f32.mxu0 0.0
      %819 = vmatmul.mubr.f32.gmra.mrb[0].mxu0 %v355
      %v820 = vpop.f32.mrb[0].mxu0
      %v821 = vadd.f32 %v327, %v820
      %v822 = vpop.f32.mrb[0].mxu0
      %823 = vmatprep.mubr.f32.mxu0 0.0
      %824 = vmatmul.mubr.f32.gmra.mrb[0].mxu0 %v358
      %v825 = vpop.f32.mrb[0].mxu0
      %v826 = vadd.f32 %v327, %v825
      %v827 = vpop.f32.mrb[0].mxu0
      %828 = vmatprep.mubr.f32.mxu0 0.0
      %829 = vmatmul.mubr.f32.gmra.mrb[0].mxu0 %v361
      %v830 = vpop.f32.mrb[0].mxu0
      %v831 = vadd.f32 %v327, %v830
      %v832 = vpop.f32.mrb[0].mxu0
      %833 = vmatprep.mubr.f32.mxu0 0.0
      %834 = vmatmul.mubr.f32.gmra.mrb[0].mxu0 %v364
      %v835 = vpop.f32.mrb[0].mxu0
      %v836 = vadd.f32 %v327, %v835
      %v837 = vpop.f32.mrb[0].mxu0
      %838 = vmatprep.mubr.f32.mxu0 0.0
      %839 = vmatmul.mubr.f32.gmra.mrb[0].mxu0 %v367
      %v840 = vpop.f32.mrb[0].mxu0
      %v841 = vadd.f32 %v327, %v840
      %v842 = vpop.f32.mrb[0].mxu0
      %843 = vmatprep.mubr.f32.mxu0 0.0
      %844 = vmatmul.mubr.f32.gmra.mrb[0].mxu0 %v370
      %v845 = vpop.f32.mrb[0].mxu0
      %v846 = vadd.f32 %v327, %v845
      %v847 = vpop.f32.mrb[0].mxu0
      %848 = vmatprep.mubr.f32.mxu0 0.0
      %849 = vmatmul.mubr.f32.gmra.mrb[0].mxu0 %v373
      %v850 = vpop.f32.mrb[0].mxu0
      %v851 = vadd.f32 %v327, %v850
      %v852 = vpop.f32.mrb[0].mxu0
      %853 = vmatprep.mubr.f32.mxu0 0.0
      %854 = vmatmul.mubr.f32.gmra.mrb[0].mxu0 %v376
      %v855 = vpop.f32.mrb[0].mxu0
      %v856 = vadd.f32 %v327, %v855
      %v857 = vpop.f32.mrb[0].mxu0
      %858 = vmatprep.mubr.f32.mxu0 0.0
      %859 = vmatmul.mubr.f32.gmra.mrb[0].mxu0 %v379
      %v860 = vpop.f32.mrb[0].mxu0
      %v861 = vadd.f32 %v327, %v860
      %v862 = vpop.f32.mrb[0].mxu0
      %863 = vmatprep.mubr.f32.mxu0 0.0
      %864 = vmatmul.mubr.f32.gmra.mrb[0].mxu0 %v382
      %v865 = vpop.f32.mrb[0].mxu0
      %v866 = vadd.f32 %v327, %v865
      %v867 = vpop.f32.mrb[0].mxu0
      %868 = vmatprep.mubr.f32.mxu0 0.0
      %869 = vmatmul.mubr.f32.gmra.mrb[0].mxu0 %v385
      %v870 = vpop.f32.mrb[0].mxu0
      %v871 = vadd.f32 %v327, %v870
      %v872 = vpop.f32.mrb[0].mxu0
      %873 = vmatprep.mubr.f32.mxu0 0.0
      %874 = vmatmul.mubr.f32.gmra.mrb[0].mxu0 %v388
      %v875 = vpop.f32.mrb[0].mxu0
      %v876 = vadd.f32 %v327, %v875
      %v877 = vpop.f32.mrb[0].mxu0
      %878 = vmatprep.mubr.f32.mxu0 0.0
      %879 = vmatmul.mubr.f32.gmra.mrb[0].mxu0 %v391
      %v880 = vpop.f32.mrb[0].mxu0
      %v881 = vadd.f32 %v327, %v880
      %v882 = vpop.f32.mrb[0].mxu0
      %883 = vmatprep.mubr.f32.mxu0 0.0
      %884 = vmatmul.mubr.f32.gmra.mrb[0].mxu0 %v394
      %v885 = vpop.f32.mrb[0].mxu0
      %v886 = vadd.f32 %v327, %v885
      %v887 = vpop.f32.mrb[0].mxu0
      %888 = vmatprep.mubr.f32.mxu0 0.0
      %889 = vmatmul.mubr.f32.gmra.mrb[0].mxu0 %v397
      %v890 = vpop.f32.mrb[0].mxu0
      %v891 = vadd.f32 %v327, %v890
      %v892 = vpop.f32.mrb[0].mxu0
      %893 = vmatprep.mubr.f32.mxu0 0.0
      %894 = vmatmul.mubr.f32.gmra.mrb[0].mxu0 %v400
      %v895 = vpop.f32.mrb[0].mxu0
      %v896 = vadd.f32 %v327, %v895
      %v897 = vpop.f32.mrb[0].mxu0
      %898 = vmatprep.mubr.f32.mxu0 0.0
      %899 = vmatmul.mubr.f32.gmra.mrb[0].mxu0 %v403
      %v900 = vpop.f32.mrb[0].mxu0
      %v901 = vadd.f32 %v327, %v900
      %v902 = vpop.f32.mrb[0].mxu0
      %903 = vmatprep.mubr.f32.mxu0 0.0
      %904 = vmatmul.mubr.f32.gmra.mrb[0].mxu0 %v406
      %v905 = vpop.f32.mrb[0].mxu0
      %v906 = vadd.f32 %v327, %v905
      %v907 = vpop.f32.mrb[0].mxu0
      %908 = vmatprep.mubr.f32.mxu0 0.0
      %909 = vmatmul.mubr.f32.gmra.mrb[0].mxu0 %v409
      %v910 = vpop.f32.mrb[0].mxu0
      %v911 = vadd.f32 %v327, %v910
      %v912 = vpop.f32.mrb[0].mxu0
      %913 = vmatprep.mubr.f32.mxu0 0.0
      %914 = vmatmul.mubr.f32.gmra.mrb[0].mxu0 %v412
      %v915 = vpop.f32.mrb[0].mxu0
      %v916 = vadd.f32 %v327, %v915
      %v917 = vpop.f32.mrb[0].mxu0
      %918 = vmatprep.mubr.f32.mxu0 0.0
      %919 = vmatmul.mubr.f32.gmra.mrb[0].mxu0 %v415
      %v920 = vpop.f32.mrb[0].mxu0
      %v921 = vadd.f32 %v327, %v920
      %v922 = vpop.f32.mrb[0].mxu0
      %923 = vmatprep.mubr.f32.mxu0 0.0
      %924 = vmatmul.mubr.f32.gmra.mrb[0].mxu0 %v418
      %v925 = vpop.f32.mrb[0].mxu0
      %v926 = vadd.f32 %v327, %v925
      %v927 = vpop.f32.mrb[0].mxu0
      %928 = vmatprep.mubr.f32.mxu0 0.0
      %929 = vmatmul.mubr.f32.gmra.mrb[0].mxu0 %v421
      %v930 = vpop.f32.mrb[0].mxu0
      %v931 = vadd.f32 %v327, %v930
      %v932 = vpop.f32.mrb[0].mxu0
      %933 = vmatprep.mubr.f32.mxu0 0.0
      %934 = vmatmul.mubr.f32.gmra.mrb[0].mxu0 %v424
      %v935 = vpop.f32.mrb[0].mxu0
      %v936 = vadd.f32 %v327, %v935
      %v937 = vpop.f32.mrb[0].mxu0
      %938 = vmatprep.mubr.f32.mxu0 0.0
      %939 = vmatmul.mubr.f32.gmra.mrb[0].mxu0 %v427
      %v940 = vpop.f32.mrb[0].mxu0
      %v941 = vadd.f32 %v327, %v940
      %v942 = vpop.f32.mrb[0].mxu0
      %943 = vmatprep.mubr.f32.mxu0 0.0
      %944 = vmatmul.mubr.f32.gmra.mrb[0].mxu0 %v430
      %v945 = vpop.f32.mrb[0].mxu0
      %v946 = vadd.f32 %v327, %v945
      %v947 = vpop.f32.mrb[0].mxu0
      %948 = vmatprep.mubr.f32.mxu0 0.0
      %949 = vmatmul.mubr.f32.gmra.mrb[0].mxu0 %v433
      %v950 = vpop.f32.mrb[0].mxu0
      %v951 = vadd.f32 %v327, %v950
      %v952 = vpop.f32.mrb[0].mxu0
      %953 = vmatprep.mubr.f32.mxu0 0.0
      %954 = vmatmul.mubr.f32.gmra.mrb[0].mxu0 %v436
      %v955 = vpop.f32.mrb[0].mxu0
      %v956 = vadd.f32 %v327, %v955
      %v957 = vpop.f32.mrb[0].mxu0
      %958 = vmatprep.mubr.f32.mxu0 0.0
      %959 = vmatmul.mubr.f32.gmra.mrb[0].mxu0 %v439
      %v960 = vpop.f32.mrb[0].mxu0
      %v961 = vadd.f32 %v327, %v960
      %v962 = vpop.f32.mrb[0].mxu0
      %963 = vmatprep.mubr.f32.mxu0 0.0
      %964 = vmatmul.mubr.f32.gmra.mrb[0].mxu0 %v442
      %v965 = vpop.f32.mrb[0].mxu0
      %v966 = vadd.f32 %v327, %v965
      %v967 = vpop.f32.mrb[0].mxu0
      %968 = vmatprep.mubr.f32.mxu0 0.0
      %969 = vmatmul.mubr.f32.gmra.mrb[0].mxu0 %v445
      %v970 = vpop.f32.mrb[0].mxu0
      %v971 = vadd.f32 %v327, %v970
      %v972 = vpop.f32.mrb[0].mxu0
      %973 = vmatprep.mubr.f32.mxu0 0.0
      %974 = vmatmul.mubr.f32.gmra.mrb[0].mxu0 %v448
      %v975 = vpop.f32.mrb[0].mxu0
      %v976 = vadd.f32 %v327, %v975
      %v977 = vpop.f32.mrb[0].mxu0
      %978 = vmatprep.mubr.f32.mxu0 0.0
      %979 = vmatmul.mubr.f32.gmra.mrb[0].mxu0 %v451
      %v980 = vpop.f32.mrb[0].mxu0
      %v981 = vadd.f32 %v327, %v980
      %v982 = vpop.f32.mrb[0].mxu0
      %983 = vmatprep.mubr.f32.mxu0 0.0
      %984 = vmatmul.mubr.f32.gmra.mrb[0].mxu0 %v454
      %v985 = vpop.f32.mrb[0].mxu0
      %v986 = vadd.f32 %v327, %v985
      %v987 = vpop.f32.mrb[0].mxu0
      %988 = vmatprep.mubr.f32.mxu0 0.0
      %989 = vmatmul.mubr.f32.gmra.mrb[0].mxu0 %v457
      %v990 = vpop.f32.mrb[0].mxu0
      %v991 = vadd.f32 %v327, %v990
      %v992 = vpop.f32.mrb[0].mxu0
      %993 = vmatprep.mubr.f32.mxu0 0.0
      %994 = vmatmul.mubr.f32.gmra.mrb[0].mxu0 %v460
      %v995 = vpop.f32.mrb[0].mxu0
      %v996 = vadd.f32 %v327, %v995
      %v997 = vpop.f32.mrb[0].mxu0
      %998 = vmatprep.mubr.f32.mxu0 0.0
      %999 = vmatmul.mubr.f32.gmra.mrb[0].mxu0 %v463
      %v1000 = vpop.f32.mrb[0].mxu0
      %v1001 = vadd.f32 %v327, %v1000
      %v1002 = vpop.f32.mrb[0].mxu0
      %1003 = vmatprep.mubr.f32.mxu0 0.0
      %1004 = vmatmul.mubr.f32.gmra.mrb[0].mxu0 %v466
      %v1005 = vpop.f32.mrb[0].mxu0
      %v1006 = vadd.f32 %v327, %v1005
      %v1007 = vpop.f32.mrb[0].mxu0
      %1008 = vmatprep.mubr.f32.mxu0 0.0
      %1009 = vmatmul.mubr.f32.gmra.mrb[0].mxu0 %v469
      %v1010 = vpop.f32.mrb[0].mxu0
      %v1011 = vadd.f32 %v327, %v1010
      %v1012 = vpop.f32.mrb[0].mxu0
      %1013 = vmatprep.mubr.f32.mxu0 0.0
      %1014 = vmatmul.mubr.f32.gmra.mrb[0].mxu0 %v472
      %v1015 = vpop.f32.mrb[0].mxu0
      %v1016 = vadd.f32 %v327, %v1015
      %v1017 = vpop.f32.mrb[0].mxu0
      %1018 = vmatprep.mubr.f32.mxu0 0.0
      %1019 = vmatmul.mubr.f32.gmra.mrb[0].mxu0 %v475
      %v1020 = vpop.f32.mrb[0].mxu0
      %v1021 = vadd.f32 %v327, %v1020
      %v1022 = vpop.f32.mrb[0].mxu0
      %1023 = vmatprep.mubr.f32.mxu0 0.0
      %1024 = vmatmul.mubr.f32.gmra.mrb[0].mxu0 %v478
      %v1025 = vpop.f32.mrb[0].mxu0
      %v1026 = vadd.f32 %v327, %v1025
      %v1027 = vpop.f32.mrb[0].mxu0
      %1028 = vmatprep.mubr.f32.mxu0 0.0
      %1029 = vmatmul.mubr.f32.gmra.mrb[0].mxu0 %v481
      %v1030 = vpop.f32.mrb[0].mxu0
      %v1031 = vadd.f32 %v327, %v1030
      %v1032 = vpop.f32.mrb[0].mxu0
      %1033 = vmatprep.mubr.f32.mxu0 0.0
      %1034 = vmatmul.mubr.f32.gmra.mrb[0].mxu0 %v484
      %v1035 = vpop.f32.mrb[0].mxu0
      %v1036 = vadd.f32 %v327, %v1035
      %v1037 = vpop.f32.mrb[0].mxu0
      %1038 = vmatprep.mubr.f32.mxu0 0.0
      %1039 = vmatmul.mubr.f32.gmra.mrb[0].mxu0 %v487
      %v1040 = vpop.f32.mrb[0].mxu0
      %v1041 = vadd.f32 %v327, %v1040
      %v1042 = vpop.f32.mrb[0].mxu0
      %1043 = vmatprep.mubr.f32.mxu0 0.0
      %1044 = vmatmul.mubr.f32.gmra.mrb[0].mxu0 %v490
      %v1045 = vpop.f32.mrb[0].mxu0
      %v1046 = vadd.f32 %v327, %v1045
      %v1047 = vpop.f32.mrb[0].mxu0
      %1048 = vmatprep.mubr.f32.mxu0 0.0
      %1049 = vmatmul.mubr.f32.gmra.mrb[0].mxu0 %v493
      %v1050 = vpop.f32.mrb[0].mxu0
      %v1051 = vadd.f32 %v327, %v1050
      %v1052 = vpop.f32.mrb[0].mxu0
      %1053 = vmatprep.mubr.f32.mxu0 0.0
      %1054 = vmatmul.mubr.f32.gmra.mrb[0].mxu0 %v496
      %v1055 = vpop.f32.mrb[0].mxu0
      %v1056 = vadd.f32 %v327, %v1055
      %v1057 = vpop.f32.mrb[0].mxu0
      %1058 = vmatprep.mubr.f32.mxu0 0.0
      %1059 = vmatmul.mubr.f32.gmra.mrb[0].mxu0 %v499
      %v1060 = vpop.f32.mrb[0].mxu0
      %v1061 = vadd.f32 %v327, %v1060
      %v1062 = vpop.f32.mrb[0].mxu0
      %1063 = vmatprep.mubr.f32.mxu0 0.0
      %1064 = vmatmul.mubr.f32.gmra.mrb[0].mxu0 %v502
      %v1065 = vpop.f32.mrb[0].mxu0
      %v1066 = vadd.f32 %v327, %v1065
      %v1067 = vpop.f32.mrb[0].mxu0
      %1068 = vmatprep.mubr.f32.mxu0 0.0
      %1069 = vmatmul.mubr.f32.gmra.mrb[0].mxu0 %v505
      %v1070 = vpop.f32.mrb[0].mxu0
      %v1071 = vadd.f32 %v327, %v1070
      %v1072 = vpop.f32.mrb[0].mxu0
      %1073 = vmatprep.mubr.f32.mxu0 0.0
      %1074 = vmatmul.mubr.f32.gmra.mrb[0].mxu0 %v508
      %v1075 = vpop.f32.mrb[0].mxu0
      %v1076 = vadd.f32 %v327, %v1075
      %v1077 = vpop.f32.mrb[0].mxu0
      %1078 = vmatprep.mubr.f32.mxu0 0.0
      %1079 = vmatmul.mubr.f32.gmra.mrb[0].mxu0 %v511
      %v1080 = vpop.f32.mrb[0].mxu0
      %v1081 = vadd.f32 %v327, %v1080
      %v1082 = vpop.f32.mrb[0].mxu0
      %1083 = vmatprep.mubr.f32.mxu0 0.0
      %1084 = vmatmul.mubr.f32.gmra.mrb[0].mxu0 %v514
      %v1085 = vpop.f32.mrb[0].mxu0
      %v1086 = vadd.f32 %v327, %v1085
      %v1087 = vpop.f32.mrb[0].mxu0
      %1088 = vmatprep.mubr.f32.mxu0 0.0
      %1089 = vmatmul.mubr.f32.gmra.mrb[0].mxu0 %v517
      %v1090 = vpop.f32.mrb[0].mxu0
      %v1091 = vadd.f32 %v327, %v1090
      %v1092 = vpop.f32.mrb[0].mxu0
      %1093 = vmatprep.mubr.f32.mxu0 0.0
      %1094 = vmatmul.mubr.f32.gmra.mrb[0].mxu0 %v520
      %v1095 = vpop.f32.mrb[0].mxu0
      %v1096 = vadd.f32 %v327, %v1095
      %v1097 = vpop.f32.mrb[0].mxu0
      %1098 = vmatprep.mubr.f32.mxu0 0.0
      %1099 = vmatmul.mubr.f32.gmra.mrb[0].mxu0 %v523
      %v1100 = vpop.f32.mrb[0].mxu0
      %v1101 = vadd.f32 %v327, %v1100
      %v1102 = vpop.f32.mrb[0].mxu0
      %1103 = vmatprep.mubr.f32.mxu0 0.0
      %1104 = vmatmul.mubr.f32.gmra.mrb[0].mxu0 %v526
      %v1105 = vpop.f32.mrb[0].mxu0
      %v1106 = vadd.f32 %v327, %v1105
      %v1107 = vpop.f32.mrb[0].mxu0
      %1108 = vmatprep.mubr.f32.mxu0 0.0
      %1109 = vmatmul.mubr.f32.gmra.mrb[0].mxu0 %v529
      %v1110 = vpop.f32.mrb[0].mxu0
      %v1111 = vadd.f32 %v327, %v1110
      %v1112 = vpop.f32.mrb[0].mxu0
      %1113 = vmatprep.mubr.f32.mxu0 0.0
      %1114 = vmatmul.mubr.f32.gmra.mrb[0].mxu0 %v532
      %v1115 = vpop.f32.mrb[0].mxu0
      %v1116 = vadd.f32 %v327, %v1115
      %v1117 = vpop.f32.mrb[0].mxu0
      %1118 = vmatprep.mubr.f32.mxu0 0.0
      %1119 = vmatmul.mubr.f32.gmra.mrb[0].mxu0 %v535
      %v1120 = vpop.f32.mrb[0].mxu0
      %v1121 = vadd.f32 %v327, %v1120
      %v1122 = vpop.f32.mrb[0].mxu0
      %1123 = vmatprep.mubr.f32.mxu0 0.0
      %1124 = vmatmul.mubr.f32.gmra.mrb[0].mxu0 %v538
      %v1125 = vpop.f32.mrb[0].mxu0
      %v1126 = vadd.f32 %v327, %v1125
      %v1127 = vpop.f32.mrb[0].mxu0
      %1128 = vmatprep.mubr.f32.mxu0 0.0
      %1129 = vmatmul.mubr.f32.gmra.mrb[0].mxu0 %v541
      %v1130 = vpop.f32.mrb[0].mxu0
      %v1131 = vadd.f32 %v327, %v1130
      %v1132 = vpop.f32.mrb[0].mxu0
      %1133 = vmatprep.mubr.f32.mxu0 0.0
      %1134 = vmatmul.mubr.f32.gmra.mrb[0].mxu0 %v544
      %v1135 = vpop.f32.mrb[0].mxu0
      %v1136 = vadd.f32 %v327, %v1135
      %v1137 = vpop.f32.mrb[0].mxu0
      %1138 = vmatprep.mubr.f32.mxu0 0.0
      %1139 = vmatmul.mubr.f32.gmra.mrb[0].mxu0 %v547
      %v1140 = vpop.f32.mrb[0].mxu0
      %v1141 = vadd.f32 %v327, %v1140
      %v1142 = vpop.f32.mrb[0].mxu0
      %1143 = vmatprep.mubr.f32.mxu0 0.0
      %1144 = vmatmul.mubr.f32.gmra.mrb[0].mxu0 %v550
      %v1145 = vpop.f32.mrb[0].mxu0
      %v1146 = vadd.f32 %v327, %v1145
      %v1147 = vpop.f32.mrb[0].mxu0
      %1148 = vmatprep.mubr.f32.mxu0 0.0
      %1149 = vmatmul.mubr.f32.gmra.mrb[0].mxu0 %v553
      %v1150 = vpop.f32.mrb[0].mxu0
      %v1151 = vadd.f32 %v327, %v1150
      %v1152 = vpop.f32.mrb[0].mxu0
      %1153 = vmatprep.mubr.f32.mxu0 0.0
      %1154 = vmatmul.mubr.f32.gmra.mrb[0].mxu0 %v556
      %v1155 = vpop.f32.mrb[0].mxu0
      %v1156 = vadd.f32 %v327, %v1155
      %v1157 = vpop.f32.mrb[0].mxu0
      %1158 = vmatprep.mubr.f32.mxu0 0.0
      %1159 = vmatmul.mubr.f32.gmra.mrb[0].mxu0 %v559
      %v1160 = vpop.f32.mrb[0].mxu0
      %v1161 = vadd.f32 %v327, %v1160
      %v1162 = vpop.f32.mrb[0].mxu0
      %1163 = vmatprep.mubr.f32.mxu0 0.0
      %1164 = vmatmul.mubr.f32.gmra.mrb[0].mxu0 %v562
      %v1165 = vpop.f32.mrb[0].mxu0
      %v1166 = vadd.f32 %v327, %v1165
      %v1167 = vpop.f32.mrb[0].mxu0
      %1168 = vmatprep.mubr.f32.mxu0 0.0
      %1169 = vmatmul.mubr.f32.gmra.mrb[0].mxu0 %v565
      %v1170 = vpop.f32.mrb[0].mxu0
      %v1171 = vadd.f32 %v327, %v1170
      %v1172 = vpop.f32.mrb[0].mxu0
      %1173 = vmatprep.mubr.f32.mxu0 0.0
      %1174 = vmatmul.mubr.f32.gmra.mrb[0].mxu0 %v568
      %v1175 = vpop.f32.mrb[0].mxu0
      %v1176 = vadd.f32 %v327, %v1175
      %v1177 = vpop.f32.mrb[0].mxu0
      %1178 = vmatprep.mubr.f32.mxu0 0.0
      %1179 = vmatmul.mubr.f32.gmra.mrb[0].mxu0 %v571
      %v1180 = vpop.f32.mrb[0].mxu0
      %v1181 = vadd.f32 %v327, %v1180
      %v1182 = vpop.f32.mrb[0].mxu0
      %1183 = vmatprep.mubr.f32.mxu0 0.0
      %1184 = vmatmul.mubr.f32.gmra.mrb[0].mxu0 %v574
      %v1185 = vpop.f32.mrb[0].mxu0
      %v1186 = vadd.f32 %v327, %v1185
      %v1187 = vpop.f32.mrb[0].mxu0
      %1188 = vmatprep.mubr.f32.mxu0 0.0
      %1189 = vmatmul.mubr.f32.gmra.mrb[0].mxu0 %v577
      %v1190 = vpop.f32.mrb[0].mxu0
      %v1191 = vadd.f32 %v327, %v1190
      %v1192 = vpop.f32.mrb[0].mxu0
      %1193 = vmatprep.mubr.f32.mxu0 0.0
      %1194 = vmatmul.mubr.f32.gmra.mrb[0].mxu0 %v580
      %v1195 = vpop.f32.mrb[0].mxu0
      %v1196 = vadd.f32 %v327, %v1195
      %v1197 = vpop.f32.mrb[0].mxu0
      %1198 = vmatprep.mubr.f32.mxu0 0.0
      %1199 = vmatmul.mubr.f32.gmra.mrb[0].mxu0 %v583
      %v1200 = vpop.f32.mrb[0].mxu0
      %v1201 = vadd.f32 %v327, %v1200
      %v1202 = vpop.f32.mrb[0].mxu0
      %1203 = vmatprep.mubr.f32.mxu0 0.0
      %1204 = vmatmul.mubr.f32.gmra.mrb[0].mxu0 %v586
      %v1205 = vpop.f32.mrb[0].mxu0
      %v1206 = vadd.f32 %v327, %v1205
      %v1207 = vpop.f32.mrb[0].mxu0
      %1208 = vmatprep.mubr.f32.mxu0 0.0
      %1209 = vmatmul.mubr.f32.gmra.mrb[0].mxu0 %v589
      %v1210 = vpop.f32.mrb[0].mxu0
      %v1211 = vadd.f32 %v327, %v1210
      %v1212 = vpop.f32.mrb[0].mxu0
      %1213 = vmatprep.mubr.f32.mxu0 0.0
      %1214 = vmatmul.mubr.f32.gmra.mrb[0].mxu0 %v592
      %v1215 = vpop.f32.mrb[0].mxu0
      %v1216 = vadd.f32 %v327, %v1215
      %v1217 = vpop.f32.mrb[0].mxu0
      %1218 = vmatprep.mubr.f32.mxu0 0.0
      %1219 = vmatmul.mubr.f32.gmra.mrb[0].mxu0 %v595
      %v1220 = vpop.f32.mrb[0].mxu0
      %v1221 = vadd.f32 %v327, %v1220
      %v1222 = vpop.f32.mrb[0].mxu0
      %1223 = vmatprep.mubr.f32.mxu0 0.0
      %1224 = vmatmul.mubr.f32.gmra.mrb[0].mxu0 %v598
      %v1225 = vpop.f32.mrb[0].mxu0
      %v1226 = vadd.f32 %v327, %v1225
      %v1227 = vpop.f32.mrb[0].mxu0
      %1228 = vmatprep.mubr.f32.mxu0 0.0
      %1229 = vmatmul.mubr.f32.gmra.mrb[0].mxu0 %v601
      %v1230 = vpop.f32.mrb[0].mxu0
      %v1231 = vadd.f32 %v327, %v1230
      %v1232 = vpop.f32.mrb[0].mxu0
      %1233 = vmatprep.mubr.f32.mxu0 0.0
      %1234 = vmatmul.mubr.f32.gmra.mrb[0].mxu0 %v604
      %v1235 = vpop.f32.mrb[0].mxu0
      %v1236 = vadd.f32 %v327, %v1235
      %v1237 = vpop.f32.mrb[0].mxu0
      %1238 = vmatprep.mubr.f32.mxu0 0.0
      %1239 = vmatmul.mubr.f32.gmra.mrb[0].mxu0 %v607
      %v1240 = vpop.f32.mrb[0].mxu0
      %v1241 = vadd.f32 %v327, %v1240
      %v1242 = vpop.f32.mrb[0].mxu0
      %1243 = vmatprep.mubr.f32.mxu0 0.0
      %1244 = vmatmul.mubr.f32.gmra.mrb[0].mxu0 %v610
      %v1245 = vpop.f32.mrb[0].mxu0
      %v1246 = vadd.f32 %v327, %v1245
      %v1247 = vpop.f32.mrb[0].mxu0
      %1248 = vmatprep.mubr.f32.mxu0 0.0
      %1249 = vmatmul.mubr.f32.gmra.mrb[0].mxu0 %v613
      %v1250 = vpop.f32.mrb[0].mxu0
      %v1251 = vadd.f32 %v327, %v1250
      %v1252 = vpop.f32.mrb[0].mxu0
      %1253 = vmatprep.mubr.f32.mxu0 0.0
      %1254 = vmatmul.mubr.f32.gmra.mrb[0].mxu0 %v616
      %v1255 = vpop.f32.mrb[0].mxu0
      %v1256 = vadd.f32 %v327, %v1255
      %v1257 = vpop.f32.mrb[0].mxu0
      %1258 = vmatprep.mubr.f32.mxu0 0.0
      %1259 = vmatmul.mubr.f32.gmra.mrb[0].mxu0 %v619
      %v1260 = vpop.f32.mrb[0].mxu0
      %v1261 = vadd.f32 %v327, %v1260
      %v1262 = vpop.f32.mrb[0].mxu0
      %1263 = vmatprep.mubr.f32.mxu0 0.0
      %1264 = vmatmul.mubr.f32.gmra.mrb[0].mxu0 %v622
      %v1265 = vpop.f32.mrb[0].mxu0
      %v1266 = vadd.f32 %v327, %v1265
      %v1267 = vpop.f32.mrb[0].mxu0
      %1268 = vmatprep.mubr.f32.mxu0 0.0
      %1269 = vmatmul.mubr.f32.gmra.mrb[0].mxu0 %v625
      %v1270 = vpop.f32.mrb[0].mxu0
      %v1271 = vadd.f32 %v327, %v1270
      %v1272 = vpop.f32.mrb[0].mxu0
      %1273 = vmatprep.mubr.f32.mxu0 0.0
      %1274 = vmatmul.mubr.f32.gmra.mrb[0].mxu0 %v628
      %v1275 = vpop.f32.mrb[0].mxu0
      %v1276 = vadd.f32 %v327, %v1275
      %v1277 = vpop.f32.mrb[0].mxu0
      %1278 = vmatprep.mubr.f32.mxu0 0.0
      %1279 = vmatmul.mubr.f32.gmra.mrb[0].mxu0 %v631
      %v1280 = vpop.f32.mrb[0].mxu0
      %v1281 = vadd.f32 %v327, %v1280
      %v1282 = vpop.f32.mrb[0].mxu0
      %1283 = vmatprep.mubr.f32.mxu0 0.0
      %1284 = vmatmul.mubr.f32.gmra.mrb[0].mxu0 %v634
      %v1285 = vpop.f32.mrb[0].mxu0
      %v1286 = vadd.f32 %v327, %v1285
      %v1287 = vpop.f32.mrb[0].mxu0
      %1288 = vmatprep.mubr.f32.mxu0 0.0
      %1289 = vmatmul.mubr.f32.gmra.mrb[0].mxu0 %v637
      %v1290 = vpop.f32.mrb[0].mxu0
      %v1291 = vadd.f32 %v327, %v1290
      %v1292 = vpop.f32.mrb[0].mxu0
      %1293 = vmatprep.mubr.f32.mxu0 0.0
      %1294 = vmatmul.mubr.f32.gmra.mrb[0].mxu0 %v640
      %v1295 = vpop.f32.mrb[0].mxu0
      %v1296 = vadd.f32 %v327, %v1295
      %v1297 = vpop.f32.mrb[0].mxu0
      %1298 = vmatprep.mubr.f32.mxu0 0.0
      %1299 = vmatmul.mubr.f32.gmra.mrb[0].mxu0 %v643
      %v1300 = vpop.f32.mrb[0].mxu0
      %v1301 = vadd.f32 %v327, %v1300
      %v1302 = vpop.f32.mrb[0].mxu0
      %1303 = vmatprep.mubr.f32.mxu0 0.0
      %1304 = vmatmul.mubr.f32.gmra.mrb[0].mxu0 %v646
      %v1305 = vpop.f32.mrb[0].mxu0
      %v1306 = vadd.f32 %v327, %v1305
      %v1307 = vpop.f32.mrb[0].mxu0
      %1308 = vmatprep.mubr.f32.mxu0 0.0
      %1309 = vmatmul.mubr.f32.gmra.mrb[0].mxu0 %v649
      %v1310 = vpop.f32.mrb[0].mxu0
      %v1311 = vadd.f32 %v327, %v1310
      %v1312 = vpop.f32.mrb[0].mxu0
      %1313 = vmatprep.mubr.f32.mxu0 0.0
      %1314 = vmatmul.mubr.f32.gmra.mrb[0].mxu0 %v652
      %v1315 = vpop.f32.mrb[0].mxu0
      %v1316 = vadd.f32 %v327, %v1315
      %v1317 = vpop.f32.mrb[0].mxu0
      %1318 = vmatprep.mubr.f32.mxu0 0.0
      %1319 = vmatmul.mubr.f32.gmra.mrb[0].mxu0 %v655
      %v1320 = vpop.f32.mrb[0].mxu0
      %v1321 = vadd.f32 %v327, %v1320
      %v1322 = vpop.f32.mrb[0].mxu0
      %1323 = vmatprep.mubr.f32.mxu0 0.0
      %1324 = vmatmul.mubr.f32.gmra.mrb[0].mxu0 %v658
      %v1325 = vpop.f32.mrb[0].mxu0
      %v1326 = vadd.f32 %v327, %v1325
      %v1327 = vpop.f32.mrb[0].mxu0
      %1328 = vmatprep.mubr.f32.mxu0 0.0
      %1329 = vmatmul.mubr.f32.gmra.mrb[0].mxu0 %v661
      %v1330 = vpop.f32.mrb[0].mxu0
      %v1331 = vadd.f32 %v327, %v1330
      %v1332 = vpop.f32.mrb[0].mxu0
      %1333 = vmatprep.mubr.f32.mxu0 0.0
      %1334 = vmatmul.mubr.f32.gmra.mrb[0].mxu0 %v664
      %v1335 = vpop.f32.mrb[0].mxu0
      %v1336 = vadd.f32 %v327, %v1335
      %v1337 = vpop.f32.mrb[0].mxu0
      %1338 = vmatprep.mubr.f32.mxu0 0.0
      %1339 = vmatmul.mubr.f32.gmra.mrb[0].mxu0 %v667
      %v1340 = vpop.f32.mrb[0].mxu0
      %v1341 = vadd.f32 %v327, %v1340
      %v1342 = vpop.f32.mrb[0].mxu0
      %1343 = vmatprep.mubr.f32.mxu0 0.0
      %1344 = vmatmul.mubr.f32.gmra.mrb[0].mxu0 %v670
      %v1345 = vpop.f32.mrb[0].mxu0
      %v1346 = vadd.f32 %v327, %v1345
      %v1347 = vpop.f32.mrb[0].mxu0
      %1348 = vmatprep.mubr.f32.mxu0 0.0
      %1349 = vmatmul.mubr.f32.gmra.mrb[0].mxu0 %v673
      %v1350 = vpop.f32.mrb[0].mxu0
      %v1351 = vadd.f32 %v327, %v1350
      %v1352 = vpop.f32.mrb[0].mxu0
      %1353 = vmatprep.mubr.f32.mxu0 0.0
      %1354 = vmatmul.mubr.f32.gmra.mrb[0].mxu0 %v676
      %v1355 = vpop.f32.mrb[0].mxu0
      %v1356 = vadd.f32 %v327, %v1355
      %v1357 = vpop.f32.mrb[0].mxu0
      %1358 = vmatprep.mubr.f32.mxu0 0.0
      %1359 = vmatmul.mubr.f32.gmra.mrb[0].mxu0 %v679
      %v1360 = vpop.f32.mrb[0].mxu0
      %v1361 = vadd.f32 %v327, %v1360
      %v1362 = vpop.f32.mrb[0].mxu0
      %1363 = vmatprep.mubr.f32.mxu0 0.0
      %1364 = vmatmul.mubr.f32.gmra.mrb[0].mxu0 %v682
      %v1365 = vpop.f32.mrb[0].mxu0
      %v1366 = vadd.f32 %v327, %v1365
      %v1367 = vpop.f32.mrb[0].mxu0
      %1368 = vmatprep.mubr.f32.mxu0 0.0
      %1369 = vmatmul.mubr.f32.gmra.mrb[0].mxu0 %v685
      %v1370 = vpop.f32.mrb[0].mxu0
      %v1371 = vadd.f32 %v327, %v1370
      %v1372 = vpop.f32.mrb[0].mxu0
      %1373 = vmatprep.mubr.f32.mxu0 0.0
      %1374 = vmatmul.mubr.f32.gmra.mrb[0].mxu0 %v688
      %v1375 = vpop.f32.mrb[0].mxu0
      %v1376 = vadd.f32 %v327, %v1375
      %v1377 = vpop.f32.mrb[0].mxu0
      %1378 = vmatprep.mubr.f32.mxu0 0.0
      %1379 = vmatmul.mubr.f32.gmra.mrb[0].mxu0 %v691
      %v1380 = vpop.f32.mrb[0].mxu0
      %v1381 = vadd.f32 %v327, %v1380
      %v1382 = vpop.f32.mrb[0].mxu0
      %1383 = vmatprep.mubr.f32.mxu0 0.0
      %1384 = vmatmul.mubr.f32.gmra.mrb[0].mxu0 %v694
      %v1385 = vpop.f32.mrb[0].mxu0
      %v1386 = vadd.f32 %v327, %v1385
      %v1387 = vpop.f32.mrb[0].mxu0
      %1388 = vmatprep.mubr.f32.mxu0 0.0
      %1389 = vmatmul.mubr.f32.gmra.mrb[0].mxu0 %v697
      %v1390 = vpop.f32.mrb[0].mxu0
      %v1391 = vadd.f32 %v327, %v1390
      %v1392 = vpop.f32.mrb[0].mxu0
      %1393 = vmatprep.mubr.f32.mxu0 0.0
      %1394 = vmatmul.mubr.f32.gmra.mrb[0].mxu0 %v700
      %v1395 = vpop.f32.mrb[0].mxu0
      %v1396 = vadd.f32 %v327, %v1395
      %v1397 = vpop.f32.mrb[0].mxu0
      %1398 = vmatprep.mubr.f32.mxu0 0.0
      %1399 = vmatmul.mubr.f32.gmra.mrb[0].mxu0 %v703
      %v1400 = vpop.f32.mrb[0].mxu0
      %v1401 = vadd.f32 %v327, %v1400
      %v1402 = vpop.f32.mrb[0].mxu0
      %1403 = vmatprep.mubr.f32.mxu0 0.0
      %1404 = vmatmul.mubr.f32.gmra.mrb[0].mxu0 %v706
      %v1405 = vpop.f32.mrb[0].mxu0
      %v1406 = vadd.f32 %v327, %v1405
      %v1407 = vpop.f32.mrb[0].mxu0
      %1408 = vmatprep.mubr.f32.mxu0 0.0
      %1409 = vmatmul.mubr.f32.gmra.mrb[0].mxu0 %v709
      %v1410 = vpop.f32.mrb[0].mxu0
      %v1411 = vadd.f32 %v327, %v1410
      %v1412 = vpop.f32.mrb[0].mxu0
      %1413 = vmatprep.mubr.f32.mxu0 0.0
      %1414 = vmatmul.mubr.f32.gmra.mrb[0].mxu0 %v712
      %v1415 = vpop.f32.mrb[0].mxu0
      %v1416 = vadd.f32 %v327, %v1415
      %v1417 = vpop.f32.mrb[0].mxu0
      %1418 = vdwg.mxu0
      %v1419 = vtanh.pop %v781
      %v1420 = vtanh.pop %v786
      %v1421 = vtanh.pop %v791
      %v1422 = vtanh.pop %v796
      %v1423 = vtanh.pop %v801
      %v1424 = vtanh.pop %v806
      %v1425 = vtanh.pop %v811
      %v1426 = vtanh.pop %v816
      %v1427 = vtanh.pop %v821
      %v1428 = vtanh.pop %v826
      %v1429 = vtanh.pop %v831
      %v1430 = vtanh.pop %v836
      %v1431 = vtanh.pop %v841
      %v1432 = vtanh.pop %v846
      %v1433 = vtanh.pop %v851
      %v1434 = vtanh.pop %v856
      %v1435 = vtanh.pop %v861
      %v1436 = vtanh.pop %v866
      %v1437 = vtanh.pop %v871
      %v1438 = vtanh.pop %v876
      %v1439 = vtanh.pop %v881
      %v1440 = vtanh.pop %v886
      %v1441 = vtanh.pop %v891
      %v1442 = vtanh.pop %v896
      %v1443 = vtanh.pop %v901
      %v1444 = vtanh.pop %v906
      %v1445 = vtanh.pop %v911
      %v1446 = vtanh.pop %v916
      %v1447 = vtanh.pop %v921
      %v1448 = vtanh.pop %v926
      %v1449 = vtanh.pop %v931
      %v1450 = vtanh.pop %v936
      %v1451 = vtanh.pop %v941
      %v1452 = vtanh.pop %v946
      %v1453 = vtanh.pop %v951
      %v1454 = vtanh.pop %v956
      %v1455 = vtanh.pop %v961
      %v1456 = vtanh.pop %v966
      %v1457 = vtanh.pop %v971
      %v1458 = vtanh.pop %v976
      %v1459 = vtanh.pop %v981
      %v1460 = vtanh.pop %v986
      %v1461 = vtanh.pop %v991
      %v1462 = vtanh.pop %v996
      %v1463 = vtanh.pop %v1001
      %v1464 = vtanh.pop %v1006
      %v1465 = vtanh.pop %v1011
      %v1466 = vtanh.pop %v1016
      %v1467 = vtanh.pop %v1021
      %v1468 = vtanh.pop %v1026
      %v1469 = vtanh.pop %v1031
      %v1470 = vtanh.pop %v1036
      %v1471 = vtanh.pop %v1041
      %v1472 = vtanh.pop %v1046
      %v1473 = vtanh.pop %v1051
      %v1474 = vtanh.pop %v1056
      %v1475 = vtanh.pop %v1061
      %v1476 = vtanh.pop %v1066
      %v1477 = vtanh.pop %v1071
      %v1478 = vtanh.pop %v1076
      %v1479 = vtanh.pop %v1081
      %v1480 = vtanh.pop %v1086
      %v1481 = vtanh.pop %v1091
      %v1482 = vtanh.pop %v1096
      %v1483 = vtanh.pop %v1101
      %v1484 = vtanh.pop %v1106
      %v1485 = vtanh.pop %v1111
      %v1486 = vtanh.pop %v1116
      %v1487 = vtanh.pop %v1121
      %v1488 = vtanh.pop %v1126
      %v1489 = vtanh.pop %v1131
      %v1490 = vtanh.pop %v1136
      %v1491 = vtanh.pop %v1141
      %v1492 = vtanh.pop %v1146
      %v1493 = vtanh.pop %v1151
      %v1494 = vtanh.pop %v1156
      %v1495 = vtanh.pop %v1161
      %v1496 = vtanh.pop %v1166
      %v1497 = vtanh.pop %v1171
      %v1498 = vtanh.pop %v1176
      %v1499 = vtanh.pop %v1181
      %v1500 = vtanh.pop %v1186
      %v1501 = vtanh.pop %v1191
      %v1502 = vtanh.pop %v1196
      %v1503 = vtanh.pop %v1201
      %v1504 = vtanh.pop %v1206
      %v1505 = vtanh.pop %v1211
      %v1506 = vtanh.pop %v1216
      %v1507 = vtanh.pop %v1221
      %v1508 = vtanh.pop %v1226
      %v1509 = vtanh.pop %v1231
      %v1510 = vtanh.pop %v1236
      %v1511 = vtanh.pop %v1241
      %v1512 = vtanh.pop %v1246
      %v1513 = vtanh.pop %v1251
      %v1514 = vtanh.pop %v1256
      %v1515 = vtanh.pop %v1261
      %v1516 = vtanh.pop %v1266
      %v1517 = vtanh.pop %v1271
      %v1518 = vtanh.pop %v1276
      %v1519 = vtanh.pop %v1281
      %v1520 = vtanh.pop %v1286
      %v1521 = vtanh.pop %v1291
      %v1522 = vtanh.pop %v1296
      %v1523 = vtanh.pop %v1301
      %v1524 = vtanh.pop %v1306
      %v1525 = vtanh.pop %v1311
      %v1526 = vtanh.pop %v1316
      %v1527 = vtanh.pop %v1321
      %v1528 = vtanh.pop %v1326
      %v1529 = vtanh.pop %v1331
      %v1530 = vtanh.pop %v1336
      %v1531 = vtanh.pop %v1341
      %v1532 = vtanh.pop %v1346
      %v1533 = vtanh.pop %v1351
      %v1534 = vtanh.pop %v1356
      %v1535 = vtanh.pop %v1361
      %v1536 = vtanh.pop %v1366
      %v1537 = vtanh.pop %v1371
      %v1538 = vtanh.pop %v1376
      %v1539 = vtanh.pop %v1381
      %v1540 = vtanh.pop %v1386
      %v1541 = vtanh.pop %v1391
      %v1542 = vtanh.pop %v1396
      %v1543 = vtanh.pop %v1401
      %v1544 = vtanh.pop %v1406
      %v1545 = vtanh.pop %v1411
      %v1546 = vtanh.pop %v1416
      %v1547 = vlaneseq
      %v1548 = vand.u32 %v1547, 127
      %v1549 = vadd.s32 %v1548, 128
      %v1550 = vadd.s32 %v1548, 256
      %v1551 = vadd.s32 %v1548, 384
      %v1552 = vadd.s32 %v1548, 512
      %v1553 = vadd.s32 %v1548, 640
      %v1554 = vadd.s32 %v1548, 768
      %v1555 = vadd.s32 %v1548, 896
      %v1556 = vlaneseq
      %v1557 = vshrl.u32 %v1556, 7
      %vm1558 = vcmp.lt.s32.totalorder %v1548, 0
      %v1559 = vsub.s32 0, %v1548
      %v1560 = vsel %vm1558, %v1559, %v1548
      %v1561 = vshrl.u32 %v1560, 2
      %v1562 = vand.u32 %v1560, 3
      %v1563 = vsub.s32 0, %v1562
      %v1564 = vsel %vm1558, %v1563, %v1562
      %vm1565 = vcmp.lt.s32.totalorder %v1549, 0
      %v1566 = vsub.s32 0, %v1549
      %v1567 = vsel %vm1565, %v1566, %v1549
      %v1568 = vshrl.u32 %v1567, 2
      %v1569 = vand.u32 %v1567, 3
      %v1570 = vsub.s32 0, %v1569
      %v1571 = vsel %vm1565, %v1570, %v1569
      %vm1572 = vcmp.lt.s32.totalorder %v1550, 0
      %v1573 = vsub.s32 0, %v1550
      %v1574 = vsel %vm1572, %v1573, %v1550
      %v1575 = vshrl.u32 %v1574, 2
      %v1576 = vand.u32 %v1574, 3
      %v1577 = vsub.s32 0, %v1576
      %v1578 = vsel %vm1572, %v1577, %v1576
      %vm1579 = vcmp.lt.s32.totalorder %v1551, 0
      %v1580 = vsub.s32 0, %v1551
      %v1581 = vsel %vm1579, %v1580, %v1551
      %v1582 = vshrl.u32 %v1581, 2
      %v1583 = vand.u32 %v1581, 3
      %v1584 = vsub.s32 0, %v1583
      %v1585 = vsel %vm1579, %v1584, %v1583
      %vm1586 = vcmp.lt.s32.totalorder %v1552, 0
      %v1587 = vsub.s32 0, %v1552
      %v1588 = vsel %vm1586, %v1587, %v1552
      %v1589 = vshrl.u32 %v1588, 2
      %v1590 = vand.u32 %v1588, 3
      %v1591 = vsub.s32 0, %v1590
      %v1592 = vsel %vm1586, %v1591, %v1590
      %vm1593 = vcmp.lt.s32.totalorder %v1553, 0
      %v1594 = vsub.s32 0, %v1553
      %v1595 = vsel %vm1593, %v1594, %v1553
      %v1596 = vshrl.u32 %v1595, 2
      %v1597 = vand.u32 %v1595, 3
      %v1598 = vsub.s32 0, %v1597
      %v1599 = vsel %vm1593, %v1598, %v1597
      %vm1600 = vcmp.lt.s32.totalorder %v1554, 0
      %v1601 = vsub.s32 0, %v1554
      %v1602 = vsel %vm1600, %v1601, %v1554
      %v1603 = vshrl.u32 %v1602, 2
      %v1604 = vand.u32 %v1602, 3
      %v1605 = vsub.s32 0, %v1604
      %v1606 = vsel %vm1600, %v1605, %v1604
      %vm1607 = vcmp.lt.s32.totalorder %v1555, 0
      %v1608 = vsub.s32 0, %v1555
      %v1609 = vsel %vm1607, %v1608, %v1555
      %v1610 = vshrl.u32 %v1609, 2
      %v1611 = vand.u32 %v1609, 3
      %v1612 = vsub.s32 0, %v1611
      %v1613 = vsel %vm1607, %v1612, %v1611
      %vm1614 = vcmp.ne.s32.totalorder %v1564, 0
      %vm1615 = vcmp.ne.s32.totalorder %v1571, 0
      %vm1616 = vcmp.ne.s32.totalorder %v1578, 0
      %vm1617 = vcmp.ne.s32.totalorder %v1585, 0
      %vm1618 = vcmp.ne.s32.totalorder %v1592, 0
      %vm1619 = vcmp.ne.s32.totalorder %v1599, 0
      %vm1620 = vcmp.ne.s32.totalorder %v1606, 0
      %vm1621 = vcmp.ne.s32.totalorder %v1613, 0
      %vm1622 = vcmp.lt.s32.totalorder %v1564, 0
      %vm1623 = vcmp.lt.s32.totalorder %v1571, 0
      %vm1624 = vcmp.lt.s32.totalorder %v1578, 0
      %vm1625 = vcmp.lt.s32.totalorder %v1585, 0
      %vm1626 = vcmp.lt.s32.totalorder %v1592, 0
      %vm1627 = vcmp.lt.s32.totalorder %v1599, 0
      %vm1628 = vcmp.lt.s32.totalorder %v1606, 0
      %vm1629 = vcmp.lt.s32.totalorder %v1613, 0
      %vm1630 = vmand %vm1622, %vm1614
      %vm1631 = vmand %vm1623, %vm1615
      %vm1632 = vmand %vm1624, %vm1616
      %vm1633 = vmand %vm1625, %vm1617
      %vm1634 = vmand %vm1626, %vm1618
      %vm1635 = vmand %vm1627, %vm1619
      %vm1636 = vmand %vm1628, %vm1620
      %vm1637 = vmand %vm1629, %vm1621
      %v1638 = vadd.s32 %v1564, 4
      %v1639 = vadd.s32 %v1571, 4
      %v1640 = vadd.s32 %v1578, 4
      %v1641 = vadd.s32 %v1585, 4
      %v1642 = vadd.s32 %v1592, 4
      %v1643 = vadd.s32 %v1599, 4
      %v1644 = vadd.s32 %v1606, 4
      %v1645 = vadd.s32 %v1613, 4
      %v1646 = vsel %vm1630, %v1638, %v1564
      %v1647 = vsel %vm1631, %v1639, %v1571
      %v1648 = vsel %vm1632, %v1640, %v1578
      %v1649 = vsel %vm1633, %v1641, %v1585
      %v1650 = vsel %vm1634, %v1642, %v1592
      %v1651 = vsel %vm1635, %v1643, %v1599
      %v1652 = vsel %vm1636, %v1644, %v1606
      %v1653 = vsel %vm1637, %v1645, %v1613
      %vm1654 = vcmp.eq.s32.totalorder %v1646, %v1557
      %vm1655 = vcmp.eq.s32.totalorder %v1647, %v1557
      %vm1656 = vcmp.eq.s32.totalorder %v1648, %v1557
      %vm1657 = vcmp.eq.s32.totalorder %v1649, %v1557
      %vm1658 = vcmp.eq.s32.totalorder %v1650, %v1557
      %vm1659 = vcmp.eq.s32.totalorder %v1651, %v1557
      %vm1660 = vcmp.eq.s32.totalorder %v1652, %v1557
      %vm1661 = vcmp.eq.s32.totalorder %v1653, %v1557
      %s1662 = smul.u32 %s15, 1024
      %v1663 = vstv %s1662
      %v1664 = vadd.s32 %v1663, %v1548
      %v1665 = vadd.s32 %v1663, %v1549
      %v1666 = vadd.s32 %v1663, %v1550
      %v1667 = vadd.s32 %v1663, %v1551
      %v1668 = vadd.s32 %v1663, %v1552
      %v1669 = vadd.s32 %v1663, %v1553
      %v1670 = vadd.s32 %v1663, %v1554
      %v1671 = vadd.s32 %v1663, %v1555
      %vm1672 = vcmp.lt.s32.totalorder %v1664, 2048
      %vm1673 = vcmp.lt.s32.totalorder %v1665, 2048
      %vm1674 = vcmp.lt.s32.totalorder %v1666, 2048
      %vm1675 = vcmp.lt.s32.totalorder %v1667, 2048
      %vm1676 = vcmp.lt.s32.totalorder %v1668, 2048
      %vm1677 = vcmp.lt.s32.totalorder %v1669, 2048
      %vm1678 = vcmp.lt.s32.totalorder %v1670, 2048
      %vm1679 = vcmp.lt.s32.totalorder %v1671, 2048
      %vm1680 = vmand %vm1654, %vm1672
      %vm1681 = vmand %vm1655, %vm1673
      %vm1682 = vmand %vm1656, %vm1674
      %vm1683 = vmand %vm1657, %vm1675
      %vm1684 = vmand %vm1658, %vm1676
      %vm1685 = vmand %vm1659, %vm1677
      %vm1686 = vmand %vm1660, %vm1678
      %vm1687 = vmand %vm1661, %vm1679
      %v1688 = vsel %vm1680, 1.0, 0.0
      %v1689 = vsel %vm1681, 1.0, 0.0
      %v1690 = vsel %vm1682, 1.0, 0.0
      %v1691 = vsel %vm1683, 1.0, 0.0
      %v1692 = vsel %vm1684, 1.0, 0.0
      %v1693 = vsel %vm1685, 1.0, 0.0
      %v1694 = vsel %vm1686, 1.0, 0.0
      %v1695 = vsel %vm1687, 1.0, 0.0
      %v1696 = vld [vmem:[#allocation2] sm:$0xf]
      %1697 = vmatprep.subr.mxu0 0.0
      %1698 = vmatpush1.msra.mxu0 %v1419
      %1699 = vmatprep.subr.mxu0 0.0
      %1700 = vmatpush1.msra.mxu0 %v1420
      %1701 = vmatprep.subr.mxu0 0.0
      %1702 = vmatpush1.msra.mxu0 %v1421
      %1703 = vmatprep.subr.mxu0 0.0
      %1704 = vmatpush1.msra.mxu0 %v1422
      %1705 = vmatprep.subr.mxu0 0.0
      %1706 = vmatpush1.msra.mxu0 %v1423
      %1707 = vmatprep.subr.mxu0 0.0
      %1708 = vmatpush1.msra.mxu0 %v1424
      %1709 = vmatprep.subr.mxu0 0.0
      %1710 = vmatpush1.msra.mxu0 %v1425
      %1711 = vmatprep.subr.mxu0 0.0
      %1712 = vmatpush1.msra.mxu0 %v1426
      %1713 = vmatprep.subr.mxu0 0.0
      %1714 = vmatpush1.msra.mxu0 %v1427
      %1715 = vmatprep.subr.mxu0 0.0
      %1716 = vmatpush1.msra.mxu0 %v1428
      %1717 = vmatprep.subr.mxu0 0.0
      %1718 = vmatpush1.msra.mxu0 %v1429
      %1719 = vmatprep.subr.mxu0 0.0
      %1720 = vmatpush1.msra.mxu0 %v1430
      %1721 = vmatprep.subr.mxu0 0.0
      %1722 = vmatpush1.msra.mxu0 %v1431
      %1723 = vmatprep.subr.mxu0 0.0
      %1724 = vmatpush1.msra.mxu0 %v1432
      %1725 = vmatprep.subr.mxu0 0.0
      %1726 = vmatpush1.msra.mxu0 %v1433
      %1727 = vmatprep.subr.mxu0 0.0
      %1728 = vmatpush1.msra.mxu0 %v1434
      %1729 = vmatprep.subr.mxu0 0.0
      %1730 = vmatpush1.msra.mxu0 %v1435
      %1731 = vmatprep.subr.mxu0 0.0
      %1732 = vmatpush1.msra.mxu0 %v1436
      %1733 = vmatprep.subr.mxu0 0.0
      %1734 = vmatpush1.msra.mxu0 %v1437
      %1735 = vmatprep.subr.mxu0 0.0
      %1736 = vmatpush1.msra.mxu0 %v1438
      %1737 = vmatprep.subr.mxu0 0.0
      %1738 = vmatpush1.msra.mxu0 %v1439
      %1739 = vmatprep.subr.mxu0 0.0
      %1740 = vmatpush1.msra.mxu0 %v1440
      %1741 = vmatprep.subr.mxu0 0.0
      %1742 = vmatpush1.msra.mxu0 %v1441
      %1743 = vmatprep.subr.mxu0 0.0
      %1744 = vmatpush1.msra.mxu0 %v1442
      %1745 = vmatprep.subr.mxu0 0.0
      %1746 = vmatpush1.msra.mxu0 %v1443
      %1747 = vmatprep.subr.mxu0 0.0
      %1748 = vmatpush1.msra.mxu0 %v1444
      %1749 = vmatprep.subr.mxu0 0.0
      %1750 = vmatpush1.msra.mxu0 %v1445
      %1751 = vmatprep.subr.mxu0 0.0
      %1752 = vmatpush1.msra.mxu0 %v1446
      %1753 = vmatprep.subr.mxu0 0.0
      %1754 = vmatpush1.msra.mxu0 %v1447
      %1755 = vmatprep.subr.mxu0 0.0
      %1756 = vmatpush1.msra.mxu0 %v1448
      %1757 = vmatprep.subr.mxu0 0.0
      %1758 = vmatpush1.msra.mxu0 %v1449
      %1759 = vmatprep.subr.mxu0 0.0
      %1760 = vmatpush1.msra.mxu0 %v1450
      %1761 = vmatprep.mubr.f32.mxu0 %v1689
      %1762 = vmatmul.mubr.f32.gmra.mrb[0].mxu0 %v1688
      %v1763 = vpop.f32.mrb[0].mxu0
      %v1764 = vadd.f32 0.0, %v1763
      %v1765 = vpop.f32.mrb[0].mxu0
      %1766 = vdwg.mxu0
      %1767 = vmatprep.subr.mxu0 0.0
      %1768 = vmatpush1.msra.mxu0 %v1451
      %1769 = vmatprep.subr.mxu0 0.0
      %1770 = vmatpush1.msra.mxu0 %v1452
      %1771 = vmatprep.subr.mxu0 0.0
      %1772 = vmatpush1.msra.mxu0 %v1453
      %1773 = vmatprep.subr.mxu0 0.0
      %1774 = vmatpush1.msra.mxu0 %v1454
      %1775 = vmatprep.subr.mxu0 0.0
      %1776 = vmatpush1.msra.mxu0 %v1455
      %1777 = vmatprep.subr.mxu0 0.0
      %1778 = vmatpush1.msra.mxu0 %v1456
      %1779 = vmatprep.subr.mxu0 0.0
      %1780 = vmatpush1.msra.mxu0 %v1457
      %1781 = vmatprep.subr.mxu0 0.0
      %1782 = vmatpush1.msra.mxu0 %v1458
      %1783 = vmatprep.subr.mxu0 0.0
      %1784 = vmatpush1.msra.mxu0 %v1459
      %1785 = vmatprep.subr.mxu0 0.0
      %1786 = vmatpush1.msra.mxu0 %v1460
      %1787 = vmatprep.subr.mxu0 0.0
      %1788 = vmatpush1.msra.mxu0 %v1461
      %1789 = vmatprep.subr.mxu0 0.0
      %1790 = vmatpush1.msra.mxu0 %v1462
      %1791 = vmatprep.subr.mxu0 0.0
      %1792 = vmatpush1.msra.mxu0 %v1463
      %1793 = vmatprep.subr.mxu0 0.0
      %1794 = vmatpush1.msra.mxu0 %v1464
      %1795 = vmatprep.subr.mxu0 0.0
      %1796 = vmatpush1.msra.mxu0 %v1465
      %1797 = vmatprep.subr.mxu0 0.0
      %1798 = vmatpush1.msra.mxu0 %v1466
      %1799 = vmatprep.subr.mxu0 0.0
      %1800 = vmatpush1.msra.mxu0 %v1467
      %1801 = vmatprep.subr.mxu0 0.0
      %1802 = vmatpush1.msra.mxu0 %v1468
      %1803 = vmatprep.subr.mxu0 0.0
      %1804 = vmatpush1.msra.mxu0 %v1469
      %1805 = vmatprep.subr.mxu0 0.0
      %1806 = vmatpush1.msra.mxu0 %v1470
      %1807 = vmatprep.subr.mxu0 0.0
      %1808 = vmatpush1.msra.mxu0 %v1471
      %1809 = vmatprep.subr.mxu0 0.0
      %1810 = vmatpush1.msra.mxu0 %v1472
      %1811 = vmatprep.subr.mxu0 0.0
      %1812 = vmatpush1.msra.mxu0 %v1473
      %1813 = vmatprep.subr.mxu0 0.0
      %1814 = vmatpush1.msra.mxu0 %v1474
      %1815 = vmatprep.subr.mxu0 0.0
      %1816 = vmatpush1.msra.mxu0 %v1475
      %1817 = vmatprep.subr.mxu0 0.0
      %1818 = vmatpush1.msra.mxu0 %v1476
      %1819 = vmatprep.subr.mxu0 0.0
      %1820 = vmatpush1.msra.mxu0 %v1477
      %1821 = vmatprep.subr.mxu0 0.0
      %1822 = vmatpush1.msra.mxu0 %v1478
      %1823 = vmatprep.subr.mxu0 0.0
      %1824 = vmatpush1.msra.mxu0 %v1479
      %1825 = vmatprep.subr.mxu0 0.0
      %1826 = vmatpush1.msra.mxu0 %v1480
      %1827 = vmatprep.subr.mxu0 0.0
      %1828 = vmatpush1.msra.mxu0 %v1481
      %1829 = vmatprep.subr.mxu0 0.0
      %1830 = vmatpush1.msra.mxu0 %v1482
      %1831 = vmatprep.mubr.f32.mxu0 %v1691
      %1832 = vmatmul.mubr.f32.gmra.mrb[0].mxu0 %v1690
      %v1833 = vpop.f32.mrb[0].mxu0
      %v1834 = vadd.f32 %v1764, %v1833
      %v1835 = vpop.f32.mrb[0].mxu0
      %1836 = vdwg.mxu0
      %1837 = vmatprep.subr.mxu0 0.0
      %1838 = vmatpush1.msra.mxu0 %v1483
      %1839 = vmatprep.subr.mxu0 0.0
      %1840 = vmatpush1.msra.mxu0 %v1484
      %1841 = vmatprep.subr.mxu0 0.0
      %1842 = vmatpush1.msra.mxu0 %v1485
      %1843 = vmatprep.subr.mxu0 0.0
      %1844 = vmatpush1.msra.mxu0 %v1486
      %1845 = vmatprep.subr.mxu0 0.0
      %1846 = vmatpush1.msra.mxu0 %v1487
      %1847 = vmatprep.subr.mxu0 0.0
      %1848 = vmatpush1.msra.mxu0 %v1488
      %1849 = vmatprep.subr.mxu0 0.0
      %1850 = vmatpush1.msra.mxu0 %v1489
      %1851 = vmatprep.subr.mxu0 0.0
      %1852 = vmatpush1.msra.mxu0 %v1490
      %1853 = vmatprep.subr.mxu0 0.0
      %1854 = vmatpush1.msra.mxu0 %v1491
      %1855 = vmatprep.subr.mxu0 0.0
      %1856 = vmatpush1.msra.mxu0 %v1492
      %1857 = vmatprep.subr.mxu0 0.0
      %1858 = vmatpush1.msra.mxu0 %v1493
      %1859 = vmatprep.subr.mxu0 0.0
      %1860 = vmatpush1.msra.mxu0 %v1494
      %1861 = vmatprep.subr.mxu0 0.0
      %1862 = vmatpush1.msra.mxu0 %v1495
      %1863 = vmatprep.subr.mxu0 0.0
      %1864 = vmatpush1.msra.mxu0 %v1496
      %1865 = vmatprep.subr.mxu0 0.0
      %1866 = vmatpush1.msra.mxu0 %v1497
      %1867 = vmatprep.subr.mxu0 0.0
      %1868 = vmatpush1.msra.mxu0 %v1498
      %1869 = vmatprep.subr.mxu0 0.0
      %1870 = vmatpush1.msra.mxu0 %v1499
      %1871 = vmatprep.subr.mxu0 0.0
      %1872 = vmatpush1.msra.mxu0 %v1500
      %1873 = vmatprep.subr.mxu0 0.0
      %1874 = vmatpush1.msra.mxu0 %v1501
      %1875 = vmatprep.subr.mxu0 0.0
      %1876 = vmatpush1.msra.mxu0 %v1502
      %1877 = vmatprep.subr.mxu0 0.0
      %1878 = vmatpush1.msra.mxu0 %v1503
      %1879 = vmatprep.subr.mxu0 0.0
      %1880 = vmatpush1.msra.mxu0 %v1504
      %1881 = vmatprep.subr.mxu0 0.0
      %1882 = vmatpush1.msra.mxu0 %v1505
      %1883 = vmatprep.subr.mxu0 0.0
      %1884 = vmatpush1.msra.mxu0 %v1506
      %1885 = vmatprep.subr.mxu0 0.0
      %1886 = vmatpush1.msra.mxu0 %v1507
      %1887 = vmatprep.subr.mxu0 0.0
      %1888 = vmatpush1.msra.mxu0 %v1508
      %1889 = vmatprep.subr.mxu0 0.0
      %1890 = vmatpush1.msra.mxu0 %v1509
      %1891 = vmatprep.subr.mxu0 0.0
      %1892 = vmatpush1.msra.mxu0 %v1510
      %1893 = vmatprep.subr.mxu0 0.0
      %1894 = vmatpush1.msra.mxu0 %v1511
      %1895 = vmatprep.subr.mxu0 0.0
      %1896 = vmatpush1.msra.mxu0 %v1512
      %1897 = vmatprep.subr.mxu0 0.0
      %1898 = vmatpush1.msra.mxu0 %v1513
      %1899 = vmatprep.subr.mxu0 0.0
      %1900 = vmatpush1.msra.mxu0 %v1514
      %1901 = vmatprep.mubr.f32.mxu0 %v1693
      %1902 = vmatmul.mubr.f32.gmra.mrb[0].mxu0 %v1692
      %v1903 = vpop.f32.mrb[0].mxu0
      %v1904 = vadd.f32 %v1834, %v1903
      %v1905 = vpop.f32.mrb[0].mxu0
      %1906 = vdwg.mxu0
      %1907 = vmatprep.subr.mxu0 0.0
      %1908 = vmatpush1.msra.mxu0 %v1515
      %1909 = vmatprep.subr.mxu0 0.0
      %1910 = vmatpush1.msra.mxu0 %v1516
      %1911 = vmatprep.subr.mxu0 0.0
      %1912 = vmatpush1.msra.mxu0 %v1517
      %1913 = vmatprep.subr.mxu0 0.0
      %1914 = vmatpush1.msra.mxu0 %v1518
      %1915 = vmatprep.subr.mxu0 0.0
      %1916 = vmatpush1.msra.mxu0 %v1519
      %1917 = vmatprep.subr.mxu0 0.0
      %1918 = vmatpush1.msra.mxu0 %v1520
      %1919 = vmatprep.subr.mxu0 0.0
      %1920 = vmatpush1.msra.mxu0 %v1521
      %1921 = vmatprep.subr.mxu0 0.0
      %1922 = vmatpush1.msra.mxu0 %v1522
      %1923 = vmatprep.subr.mxu0 0.0
      %1924 = vmatpush1.msra.mxu0 %v1523
      %1925 = vmatprep.subr.mxu0 0.0
      %1926 = vmatpush1.msra.mxu0 %v1524
      %1927 = vmatprep.subr.mxu0 0.0
      %1928 = vmatpush1.msra.mxu0 %v1525
      %1929 = vmatprep.subr.mxu0 0.0
      %1930 = vmatpush1.msra.mxu0 %v1526
      %1931 = vmatprep.subr.mxu0 0.0
      %1932 = vmatpush1.msra.mxu0 %v1527
      %1933 = vmatprep.subr.mxu0 0.0
      %1934 = vmatpush1.msra.mxu0 %v1528
      %1935 = vmatprep.subr.mxu0 0.0
      %1936 = vmatpush1.msra.mxu0 %v1529
      %1937 = vmatprep.subr.mxu0 0.0
      %1938 = vmatpush1.msra.mxu0 %v1530
      %1939 = vmatprep.subr.mxu0 0.0
      %1940 = vmatpush1.msra.mxu0 %v1531
      %1941 = vmatprep.subr.mxu0 0.0
      %1942 = vmatpush1.msra.mxu0 %v1532
      %1943 = vmatprep.subr.mxu0 0.0
      %1944 = vmatpush1.msra.mxu0 %v1533
      %1945 = vmatprep.subr.mxu0 0.0
      %1946 = vmatpush1.msra.mxu0 %v1534
      %1947 = vmatprep.subr.mxu0 0.0
      %1948 = vmatpush1.msra.mxu0 %v1535
      %1949 = vmatprep.subr.mxu0 0.0
      %1950 = vmatpush1.msra.mxu0 %v1536
      %1951 = vmatprep.subr.mxu0 0.0
      %1952 = vmatpush1.msra.mxu0 %v1537
      %1953 = vmatprep.subr.mxu0 0.0
      %1954 = vmatpush1.msra.mxu0 %v1538
      %1955 = vmatprep.subr.mxu0 0.0
      %1956 = vmatpush1.msra.mxu0 %v1539
      %1957 = vmatprep.subr.mxu0 0.0
      %1958 = vmatpush1.msra.mxu0 %v1540
      %1959 = vmatprep.subr.mxu0 0.0
      %1960 = vmatpush1.msra.mxu0 %v1541
      %1961 = vmatprep.subr.mxu0 0.0
      %1962 = vmatpush1.msra.mxu0 %v1542
      %1963 = vmatprep.subr.mxu0 0.0
      %1964 = vmatpush1.msra.mxu0 %v1543
      %1965 = vmatprep.subr.mxu0 0.0
      %1966 = vmatpush1.msra.mxu0 %v1544
      %1967 = vmatprep.subr.mxu0 0.0
      %1968 = vmatpush1.msra.mxu0 %v1545
      %1969 = vmatprep.subr.mxu0 0.0
      %1970 = vmatpush1.msra.mxu0 %v1546
      %1971 = vmatprep.mubr.f32.mxu0 %v1695
      %1972 = vmatmul.mubr.f32.gmra.mrb[0].mxu0 %v1694
      %v1973 = vpop.f32.mrb[0].mxu0
      %v1974 = vadd.f32 %v1904, %v1973
      %v1975 = vpop.f32.mrb[0].mxu0
      %1976 = vdwg.mxu0
      %v1977 = vadd.f32 %v1696, %v1974
      %1978 = vst [vmem:[#allocation2] sm:$0xf] %v1977
      %p1979 = scmp.eq.s32.totalorder %s15, 1
      // Predicated region
      $region41: #{tpu_custom_call.1} parent=35 // pred_check
        %p1980 = pneg %p1979
      $region42: #{tpu_custom_call.1} parent=35 // pred_check_branch
        %1982 = sbr.rel (%p1980) target = $region44
      $region43: #{tpu_custom_call.1} parent=35 // pred_region
        %v1983 = vld [vmem:[#allocation2] sm:$0xf]
        %v1984 = vmul.f32 %v1983, 0.001953125
        %v1985 = vld [vmem:[%s3] sm:$0x1]
        %v1987 = vlaneseq
        %v1988 = vshrl.u32 %v1987, 7
        %v1989 = vsub.s32 0, %v1988
        %v1990 = vrot.slane %v1985, %v1989
        %v1992 = vmul.f32 %v1984, %v1990
        %vm1993 = vcmask 1043456
        %v1994 = vsel %vm1993, %v1992, 0.0
        %1995 = vadd.xlane.f32.xlu0 %v1994
        %v1996 = vpop.xlane.xlu0 %1995
        %v1997 = vsel %vm1993, %v1996, -inf
        %v1998 = vrot.slane %v1997, 4
        %v1999 = vmax.f32 %v1997, %v1998
        %v2000 = vrot.slane %v1999, 2
        %v2001 = vmax.f32 %v1999, %v2000
        %v2002 = vrot.slane %v2001, 1
        %v2003 = vmax.f32 %v2001, %v2002
        %v2004 = vsub.f32 %v1996, %v2003
        %v2005 = vmul.f32 %v2004, 1.442695
        %v2006 = vpow.pop %v2005
        %v2007 = vsel %vm1993, %v2006, 0.0
        %v2008 = vrot.slane %v2007, 4
        %v2009 = vadd.f32 %v2007, %v2008
        %v2010 = vrot.slane %v2009, 2
        %v2011 = vadd.f32 %v2009, %v2010
        %v2012 = vrot.slane %v2011, 1
        %v2013 = vadd.f32 %v2011, %v2012
        %v2014 = vrcp.pop %v2013
        %v2015 = vmul.f32 %v2006, %v2014
        %vm2016 = vcmask 3072
        %2017 = vst.msk [vmem:[%s4] sm:$0xf] %vm2016, %v2015
      $region44: #{tpu_custom_call.1} parent=35 // pred_fallthru
        _
      // Predicated region
      $region45: #{tpu_custom_call.1} parent=35 // pred_check
        %p2018 = pneg %p117
      $region46: #{tpu_custom_call.1} parent=35 // pred_check_branch
        %2020 = sbr.rel (%p2018) target = $region48
      $region47: #{tpu_custom_call.1} parent=35 // pred_region
        _
      $region48: #{tpu_custom_call.1} parent=35 // pred_fallthru
        _
      // Predicated region
      $region49: #{tpu_custom_call.1} parent=35 // pred_check
        %p2021 = pneg %p117
      $region50: #{tpu_custom_call.1} parent=35 // pred_check_branch
        %2023 = sbr.rel (%p2021) target = $region52
      $region51: #{tpu_custom_call.1} parent=35 // pred_region
        _
      $region52: #{tpu_custom_call.1} parent=35 // pred_fallthru
        _
    $region36: #{tpu_custom_call.1} parent=5 // pred_fallthru
      _
    %p2024 = scmp.le.s32.totalorder 2, %s10
    // Predicated region
    $region53: #{tpu_custom_call.1} parent=5 // pred_check
      %p2025 = pneg %p2024
    $region54: #{tpu_custom_call.1} parent=5 // pred_check_branch
      %2027 = sbr.rel (%p2025) target = $region56
    $region55: #{tpu_custom_call.1} parent=5 // pred_region
      %s2028 = ssub.s32 %s10, 2
    $region56: #{tpu_custom_call.1} parent=5 // pred_fallthru
      _
  $region6: #{tpu_custom_call.1} parent=0 // loop_footer
    %s14 = sadd.s32 1, %s10
  $region7: #{tpu_custom_call.1} parent=0 // loop_footer_branch
    %9 = sbr.rel target = $region3
  $region8: #{tpu_custom_call.1} parent=0 // loop_exit
    _

</llo_original>
